<compile_context>
chip_gen: v6e
topology: v6e:2x2x1
jax: 0.10.0
libtpu: 0.0.40
codegen_flags: <defaults>
</compile_context>

<pallas_src>
import functools

import jax
import jax.numpy as jnp
from jax.experimental import pallas as pl
from jax.experimental.pallas import tpu as pltpu

MXU_DTYPE = jnp.bfloat16            # matmul operand dtype (f32 accumulation)
ACT_DTYPE = jnp.bfloat16            # residual stream between kernels
VMEM_LIMIT_BYTES = 48 * 1024 * 1024  # > v5e/v6e scoped defaults, < v7x physical
ROW_TILE = 256                      # token-row tile (sized for v7x 64 MiB VMEM)
Q_TILE = 128                        # query tile inside the attention core


# ----------------------------------------------------------------------------
# Helpers
# ----------------------------------------------------------------------------
def _round_up(x, m):
    return (x + m - 1) // m * m


def _cparams(n_parallel_axes):
    return pltpu.CompilerParams(
        dimension_semantics=("parallel",) * n_parallel_axes,
        vmem_limit_bytes=VMEM_LIMIT_BYTES)


def _row_tile(m, target=ROW_TILE):
    """Row tile <= target, multiple of 8 (sublane).  Rows are zero-padded up to
    a multiple of the tile, so we never fall back to one whole-array block."""
    tm = min(target, _round_up(max(m, 1), 8))
    return tm, _round_up(m, tm)


def _pad_rows(x, rows):
    if x.shape[0] == rows:
        return x
    pad = [(0, rows - x.shape[0])] + [(0, 0)] * (x.ndim - 1)
    return jnp.pad(x, pad)


def _bcast_spec(shape):
    """Grid-invariant operand (weights / LN params): same block every step.
    TODO(synk): pipeline_mode=pl.Buffered(1) would halve invariant-weight VMEM;
    left off here to keep lowering maximally portable across jax versions."""
    zeros = (0,) * len(shape)
    return pl.BlockSpec(shape, lambda *_: zeros)


def _gelu(x):
    # tanh-GELU routes the transcendental to the EUP slot (perf review);
    # torch nn.GELU uses exact erf -> expect ~1e-3 relative deviation.
    return jax.nn.gelu(x, approximate=True)


def _layernorm(x, g, b, eps):
    mu = jnp.mean(x, axis=-1, keepdims=True)
    var = jnp.mean(jnp.square(x - mu), axis=-1, keepdims=True)
    return (x - mu) * jax.lax.rsqrt(var + eps) * g + b


# ----------------------------------------------------------------------------
# Row-tiled linear kernels (patch embedding, side fc)
# ----------------------------------------------------------------------------
def _linear_bias_kernel(x_ref, w_ref, b_ref, o_ref):
    y = jnp.dot(x_ref[...].astype(MXU_DTYPE), w_ref[...],
                preferred_element_type=jnp.float32) + b_ref[...]
    o_ref[...] = y.astype(o_ref.dtype)


def _linear_nobias_kernel(x_ref, w_ref, o_ref):
    y = jnp.dot(x_ref[...].astype(MXU_DTYPE), w_ref[...],
                preferred_element_type=jnp.float32)
    o_ref[...] = y.astype(o_ref.dtype)


def pallas_linear(x, w_bf16, b=None, out_dtype=None, tile=ROW_TILE):
    """y = x @ w (+ b); row-tiled, zero-padded tail rows, bf16 MXU operands."""
    M, K = x.shape
    N = w_bf16.shape[1]
    out_dtype = out_dtype or x.dtype
    tm, Mp = _row_tile(M, tile)
    xp = _pad_rows(x, Mp)
    row_in = pl.BlockSpec((tm, K), lambda i: (i, 0))
    row_out = pl.BlockSpec((tm, N), lambda i: (i, 0))
    if b is None:
        out = pl.pallas_call(
            _linear_nobias_kernel,
            out_shape=jax.ShapeDtypeStruct((Mp, N), out_dtype),
            grid=(Mp // tm,),
            in_specs=[row_in, _bcast_spec((K, N))],
            out_specs=row_out,
            compiler_params=_cparams(1),
        )(xp, w_bf16)
    else:
        out = pl.pallas_call(
            _linear_bias_kernel,
            out_shape=jax.ShapeDtypeStruct((Mp, N), out_dtype),
            grid=(Mp // tm,),
            in_specs=[row_in, _bcast_spec((K, N)), _bcast_spec((1, N))],
            out_specs=row_out,
            compiler_params=_cparams(1),
        )(xp, w_bf16, b.reshape(1, N).astype(jnp.float32))
    return out[:M] if Mp != M else out


# ----------------------------------------------------------------------------
# Transformer block kernels
# ----------------------------------------------------------------------------
def _ln_qkv_kernel(h_ref, g_ref, b_ref, w_ref, wb_ref, o_ref, *, eps):
    """LN1 -> fused (tm,E)@(E,3E) QKV matmul + bias."""
    h = h_ref[...].astype(jnp.float32)
    hn = _layernorm(h, g_ref[...], b_ref[...], eps)
    qkv = jnp.dot(hn.astype(MXU_DTYPE), w_ref[...],
                  preferred_element_type=jnp.float32) + wb_ref[...]
    o_ref[...] = qkv.astype(o_ref.dtype)


def ln_qkv(h2d, blk, *, eps=1e-6, tile=ROW_TILE):
    M, E = h2d.shape
    N3 = blk["qkv_w"].shape[1]
    tm, Mp = _row_tile(M, tile)
    hp = _pad_rows(h2d, Mp)
    out = pl.pallas_call(
        functools.partial(_ln_qkv_kernel, eps=eps),
        out_shape=jax.ShapeDtypeStruct((Mp, N3), ACT_DTYPE),
        grid=(Mp // tm,),
        in_specs=[pl.BlockSpec((tm, E), lambda i: (i, 0)),
                  _bcast_spec((1, E)), _bcast_spec((1, E)),
                  _bcast_spec((E, N3)), _bcast_spec((1, N3))],
        out_specs=pl.BlockSpec((tm, N3), lambda i: (i, 0)),
        compiler_params=_cparams(1),
    )(hp, blk["ln1_g"], blk["ln1_b"], blk["qkv_w"], blk["qkv_b"])
    return out[:M] if Mp != M else out


def _attn_core_kernel(q_ref, k_ref, v_ref, o_ref, *, scale):
    """q:(tq,Dh), k/v:(S,Dh) bf16 for one (batch,head); softmax in f32."""
    s = jax.lax.dot_general(q_ref[...], k_ref[...], (((1,), (1,)), ((), ())),
                            preferred_element_type=jnp.float32) * scale  # (tq,S)
    s = s - jnp.max(s, axis=-1, keepdims=True)
    p = jnp.exp(s)
    p = p * pl.reciprocal(jnp.sum(p, axis=-1, keepdims=True), approx=True)
    o = jnp.dot(p.astype(MXU_DTYPE), v_ref[...], preferred_element_type=jnp.float32)
    o_ref[...] = o.astype(o_ref.dtype)


def attention_core(q, k, v, *, scale, q_tile=Q_TILE):
    """q, k, v: (B*heads, S, Dh).  Grid over (batch*head, query tiles); query
    rows are zero-padded to the tile (padded rows discarded), K/V stay whole.
    TODO(synk): for very long S add KV tiling with online softmax (flash);
    ViT3D sequence lengths fit comfortably with full-KV scores per q tile."""
    BH, S, Dh = q.shape
    tq = min(q_tile, _round_up(S, 8))
    Sp = _round_up(S, tq)
    qp = jnp.pad(q, ((0, 0), (0, Sp - S), (0, 0))) if Sp != S else q
    q_spec = pl.BlockSpec((None, tq, Dh), lambda bh, qi: (bh, qi, 0))
    kv_spec = pl.BlockSpec((None, S, Dh), lambda bh, qi: (bh, 0, 0))
    out = pl.pallas_call(
        functools.partial(_attn_core_kernel, scale=scale),
        out_shape=jax.ShapeDtypeStruct((BH, Sp, Dh), ACT_DTYPE),
        grid=(BH, Sp // tq),
        in_specs=[q_spec, kv_spec, kv_spec],
        out_specs=q_spec,
        compiler_params=_cparams(2),
    )(qp, k, v)
    return out[:, :S] if Sp != S else out


def _proj_mlp_kernel(a_ref, h_ref, pw_ref, pb_ref, g_ref, b_ref,
                     w1_ref, b1_ref, w2_ref, b2_ref, o_ref, *, eps):
    """Fused: attention output projection + residual -> LN2 -> MLP -> residual."""
    h = h_ref[...].astype(jnp.float32)
    attn = jnp.dot(a_ref[...], pw_ref[...],
                   preferred_element_type=jnp.float32) + pb_ref[...]
    h1 = h + attn
    hn = _layernorm(h1, g_ref[...], b_ref[...], eps)
    f = jnp.dot(hn.astype(MXU_DTYPE), w1_ref[...],
                preferred_element_type=jnp.float32) + b1_ref[...]
    f = _gelu(f)
    f = jnp.dot(f.astype(MXU_DTYPE), w2_ref[...],
                preferred_element_type=jnp.float32) + b2_ref[...]
    o_ref[...] = (h1 + f).astype(o_ref.dtype)


def proj_mlp(attn2d, h2d, blk, *, eps=1e-6, tile=ROW_TILE):
    M, E = h2d.shape
    Hh = blk["w1"].shape[1]
    tm, Mp = _row_tile(M, tile)
    ap, hp = _pad_rows(attn2d, Mp), _pad_rows(h2d, Mp)
    row = pl.BlockSpec((tm, E), lambda i: (i, 0))
    out = pl.pallas_call(
        functools.partial(_proj_mlp_kernel, eps=eps),
        out_shape=jax.ShapeDtypeStruct((Mp, E), ACT_DTYPE),
        grid=(Mp // tm,),
        in_specs=[row, row,
                  _bcast_spec((E, E)), _bcast_spec((1, E)),
                  _bcast_spec((1, E)), _bcast_spec((1, E)),
                  _bcast_spec((E, Hh)), _bcast_spec((1, Hh)),
                  _bcast_spec((Hh, E)), _bcast_spec((1, E))],
        out_specs=row,
        compiler_params=_cparams(1),
    )(ap, hp, blk["proj_w"], blk["proj_b"], blk["ln2_g"], blk["ln2_b"],
      blk["w1"], blk["b1"], blk["w2"], blk["b2"])
    return out[:M] if Mp != M else out


def _final_head_kernel(xc_ref, sx_ref, g_ref, b_ref, a_ref, w_ref, hb_ref, o_ref, *, eps):
    """Final LayerNorm (cls rows only) -> sigmoid(alpha) side-tune blend -> head."""
    x = xc_ref[...].astype(jnp.float32)
    xn = _layernorm(x, g_ref[...], b_ref[...], eps)
    a = jax.nn.sigmoid(a_ref[...])
    fused = a * xn + (1.0 - a) * sx_ref[...].astype(jnp.float32)
    y = jnp.dot(fused.astype(MXU_DTYPE), w_ref[...],
                preferred_element_type=jnp.float32) + hb_ref[...]
    o_ref[...] = y.astype(o_ref.dtype)


def final_head(x_cls, side_x, prep, *, eps=1e-6, tile=ROW_TILE):
    B, E = x_cls.shape
    N = prep["head_w"].shape[1]
    tb, Bp = _row_tile(B, tile)
    xp, sp = _pad_rows(x_cls, Bp), _pad_rows(side_x, Bp)
    row_in = pl.BlockSpec((tb, E), lambda i: (i, 0))
    out = pl.pallas_call(
        functools.partial(_final_head_kernel, eps=eps),
        out_shape=jax.ShapeDtypeStruct((Bp, N), jnp.float32),
        grid=(Bp // tb,),
        in_specs=[row_in, row_in, _bcast_spec((1, E)), _bcast_spec((1, E)),
                  _bcast_spec((1, 1)), _bcast_spec((E, N)), _bcast_spec((1, N))],
        out_specs=pl.BlockSpec((tb, N), lambda i: (i, 0)),
        compiler_params=_cparams(1),
    )(xp, sp, prep["norm_g"], prep["norm_b"], prep["side_alpha"],
      prep["head_w"], prep["head_b"])
    return out[:B] if Bp != B else out


# ----------------------------------------------------------------------------
# Parameter init (deterministic, synthetic — mirrors module __init__ shapes)
# ----------------------------------------------------------------------------
def init_params(key, *, in_chans, patch_size, embed_dim, depth, n_heads,
                mlp_ratio, n_classes, n_patches):
    del n_heads  # head split is a pure layout choice at runtime
    hidden = int(embed_dim * mlp_ratio)
    keys = iter(jax.random.split(key, 8 + 4 * depth))

    def nrm(shape, std=0.02):
        return (std * jax.random.normal(next(keys), shape)).astype(jnp.float32)

    patch_in = in_chans * patch_size ** 3
    params = dict(
        patch_w=nrm((patch_in, embed_dim)),              # PatchEmbed3D conv kernel, flattened
        patch_b=jnp.zeros((embed_dim,), jnp.float32),
        cls_token=nrm((1, 1, embed_dim), std=1e-6),      # nn.init.normal_(cls_token, std=1e-6)
        pos_embed=nrm((1, 1 + n_patches, embed_dim)),    # trunc_normal_(pos_embed, std=0.02)
        norm_g=jnp.ones((embed_dim,), jnp.float32),
        norm_b=jnp.zeros((embed_dim,), jnp.float32),
        head_w=nrm((embed_dim, n_classes)),
        head_b=jnp.zeros((n_classes,), jnp.float32),
        side_fc_w=nrm((in_chans, embed_dim)),            # side.fc replacement (bias=False)
        side_alpha=jnp.full((1, 1), 0.8, jnp.float32),   # nn.Parameter(torch.tensor(0.8))
        blocks=[],
    )
    for _ in range(depth):
        params["blocks"].append(dict(
            ln1_g=jnp.ones((embed_dim,), jnp.float32),
            ln1_b=jnp.zeros((embed_dim,), jnp.float32),
            qkv_w=nrm((embed_dim, 3 * embed_dim)),
            qkv_b=jnp.zeros((3 * embed_dim,), jnp.float32),
            proj_w=nrm((embed_dim, embed_dim)),
            proj_b=jnp.zeros((embed_dim,), jnp.float32),
            ln2_g=jnp.ones((embed_dim,), jnp.float32),
            ln2_b=jnp.zeros((embed_dim,), jnp.float32),
            fc1_w=nrm((embed_dim, hidden)),
            fc1_b=jnp.zeros((hidden,), jnp.float32),
            fc2_w=nrm((hidden, embed_dim)),
            fc2_b=jnp.zeros((embed_dim,), jnp.float32),
        ))
    return params


def prepare_params(params):
    """One-time weight prep: bf16 MXU operands, (1,N)-shaped f32 biases / LN
    params.  The fused (E,3E) QKV weight stays whole (lane-dense); the per-head
    split is done once per block by cheap XLA reshape/transpose on activations."""
    E = params["pos_embed"].shape[-1]
    prep = dict(
        pos_embed=params["pos_embed"],
        cls_token=params["cls_token"],
        patch_w=params["patch_w"].astype(MXU_DTYPE),
        patch_b=params["patch_b"],
        side_fc_w=params["side_fc_w"].astype(MXU_DTYPE),
        norm_g=params["norm_g"].reshape(1, E),
        norm_b=params["norm_b"].reshape(1, E),
        head_w=params["head_w"].astype(MXU_DTYPE),
        head_b=params["head_b"].reshape(1, -1),
        side_alpha=params["side_alpha"],
        blocks=[],
    )
    for blk in params["blocks"]:
        prep["blocks"].append(dict(
            ln1_g=blk["ln1_g"].reshape(1, E), ln1_b=blk["ln1_b"].reshape(1, E),
            qkv_w=blk["qkv_w"].astype(MXU_DTYPE), qkv_b=blk["qkv_b"].reshape(1, -1),
            proj_w=blk["proj_w"].astype(MXU_DTYPE), proj_b=blk["proj_b"].reshape(1, E),
            ln2_g=blk["ln2_g"].reshape(1, E), ln2_b=blk["ln2_b"].reshape(1, E),
            w1=blk["fc1_w"].astype(MXU_DTYPE), b1=blk["fc1_b"].reshape(1, -1),
            w2=blk["fc2_w"].astype(MXU_DTYPE), b2=blk["fc2_b"].reshape(1, -1),
        ))
    return prep


# ----------------------------------------------------------------------------
# Forward pass (mirrors SideTune_ViT3D.forward; dropout/drop-path = identity)
# ----------------------------------------------------------------------------
def forward(prep, x, *, patch_size, n_heads, eps=1e-6):
    B, C, D, H, W = x.shape
    P = patch_size
    E = prep["pos_embed"].shape[-1]
    Dh = E // n_heads
    scale = Dh ** -0.5

    # ---- side branch ----
    # TODO(synk): make_resnet1523d (ResNet-152 3D backbone) is not reproduced;
    # substituted by global-average-pooling + the replaced side.fc (bias=False).
    pooled = jnp.mean(x, axis=(2, 3, 4))                                   # (B, C)
    side_x = pallas_linear(pooled, prep["side_fc_w"], out_dtype=jnp.float32)

    # ---- patch embedding (conv3d k=s=P  ==  patchify + matmul) ----
    gd, gh, gw = D // P, H // P, W // P
    n_patches = gd * gh * gw
    patches = x.reshape(B, C, gd, P, gh, P, gw, P)
    patches = patches.transpose(0, 2, 4, 6, 1, 3, 5, 7).reshape(B * n_patches, C * P ** 3)
    tok = pallas_linear(patches.astype(ACT_DTYPE), prep["patch_w"], prep["patch_b"],
                        out_dtype=jnp.float32).reshape(B, n_patches, E)

    # ---- cls token + positional embedding; carry the residual stream in bf16 ----
    cls = jnp.broadcast_to(prep["cls_token"], (B, 1, E))
    h = (jnp.concatenate([cls, tok], axis=1) + prep["pos_embed"]).astype(ACT_DTYPE)
    S = 1 + n_patches
    h2d = h.reshape(B * S, E)

    # ---- transformer blocks: LN1+fused-QKV  ->  attention core  ->  proj+MLP ----
    for blk in prep["blocks"]:
        qkv = ln_qkv(h2d, blk, eps=eps)                                    # (B*S, 3E) bf16
        qkv = qkv.reshape(B, S, 3, n_heads, Dh).transpose(2, 0, 3, 1, 4)   # XLA layout glue
        q = qkv[0].reshape(B * n_heads, S, Dh)
        k = qkv[1].reshape(B * n_heads, S, Dh)
        v = qkv[2].reshape(B * n_heads, S, Dh)
        o = attention_core(q, k, v, scale=scale)                           # (B*nH, S, Dh)
        o = o.reshape(B, n_heads, S, Dh).transpose(0, 2, 1, 3).reshape(B * S, E)
        h2d = proj_mlp(o, h2d, blk, eps=eps)                               # (B*S, E) bf16

    # ---- final LN (cls rows only — identical to norm-then-slice), blend, head ----
    x_cls = h2d.reshape(B, S, E)[:, 0]                                     # (B, E)
    return final_head(x_cls, side_x, prep, eps=eps)                        # (B, n_classes)


# ----------------------------------------------------------------------------
# Main
# ----------------------------------------------------------------------------
if __name__ == "__main__":
    B, C = 2, 3
    IMG = 8            # cubic 3D volume (8, 8, 8)
    P = 4              # patch size
    E = 32             # embed dim
    DEPTH = 2
    HEADS = 4
    N_CLASSES = 10
    n_patches = (IMG // P) ** 3

    key = jax.random.PRNGKey(0)
    k_params, k_x = jax.random.split(key)
    params = init_params(k_params, in_chans=C, patch_size=P, embed_dim=E,
                         depth=DEPTH, n_heads=HEADS, mlp_ratio=4.0,
                         n_classes=N_CLASSES, n_patches=n_patches)
    prep = prepare_params(params)
    x = jax.random.normal(k_x, (B, C, IMG, IMG, IMG), jnp.float32)

    fwd = jax.jit(functools.partial(forward, patch_size=P, n_heads=HEADS))
    out = jax.block_until_ready(fwd(prep, x))
    assert out.shape == (B, N_CLASSES)
    assert bool(jnp.all(jnp.isfinite(out)))
    print("KERNEL_OK")
</pallas_src>

<mosaic_0001>
module attributes {stable_mosaic.version = 11 : i64} {
  func.func @_linear_bias_kernel(%arg0: i32, %arg1: memref<16x192xbf16, #tpu.memory_space<vmem>>, %arg2: memref<192x32xbf16, #tpu.memory_space<vmem>>, %arg3: memref<1x32xf32, #tpu.memory_space<vmem>>, %arg4: memref<16x32xf32, #tpu.memory_space<vmem>>) attributes {dimension_semantics = [#tpu.dimension_semantics<parallel>], iteration_bounds = array<i64: 1>, scalar_prefetch = 0 : i64, scratch_operands = 0 : i64, tpu.core_type = #tpu.core_type<tc>, window_params = [{transform_indices = @transform_0, window_bounds = array<i64: 16, 192>}, {pipeline_mode = #tpu.pipeline_mode<synchronous>, transform_indices = @transform_1, window_bounds = array<i64: 192, 32>}, {pipeline_mode = #tpu.pipeline_mode<synchronous>, transform_indices = @transform_2, window_bounds = array<i64: 1, 32>}, {transform_indices = @transform_3, window_bounds = array<i64: 16, 32>}]} {
    %c0 = arith.constant 0 : index
    %c0_0 = arith.constant 0 : index
    %0 = vector.load %arg1[%c0, %c0_0] : memref<16x192xbf16, #tpu.memory_space<vmem>>, vector<16x192xbf16>
    %c0_1 = arith.constant 0 : index
    %c0_2 = arith.constant 0 : index
    %1 = vector.load %arg2[%c0_1, %c0_2] : memref<192x32xbf16, #tpu.memory_space<vmem>>, vector<192x32xbf16>
    %cst = arith.constant dense<0.000000e+00> : vector<16x32xf32>
    %2 = tpu.matmul %0, %1, %cst {dimension_numbers = #tpu.dot_dimension_numbers<[1], [0], [0], [1], [0, 0, 1, 1], [], []>} : vector<16x192xbf16>, vector<192x32xbf16>, vector<16x32xf32> -> vector<16x32xf32>
    %c0_3 = arith.constant 0 : index
    %c0_4 = arith.constant 0 : index
    %3 = vector.load %arg3[%c0_3, %c0_4] : memref<1x32xf32, #tpu.memory_space<vmem>>, vector<1x32xf32>
    %4 = vector.broadcast %3 : vector<1x32xf32> to vector<16x32xf32>
    %5 = arith.addf %2, %4 : vector<16x32xf32>
    %c0_5 = arith.constant 0 : index
    %c0_6 = arith.constant 0 : index
    %6 = vector.load %arg4[%c0_5, %c0_6] : memref<16x32xf32, #tpu.memory_space<vmem>>, vector<16x32xf32>
    tpu.vector_store %arg4[%c0_5, %c0_6], %5 {strides = array<i32>} : memref<16x32xf32, #tpu.memory_space<vmem>>, vector<16x32xf32>,
    return
  }
  func.func @transform_0(%arg0: i32) -> (i32, i32) {
    %c0_i32 = arith.constant 0 : i32
    %c0_i32_0 = arith.constant 0 : i32
    return %arg0, %c0_i32 : i32, i32
  }
  func.func @transform_1(%arg0: i32) -> (i32, i32) {
    %c0_i32 = arith.constant 0 : i32
    %c0_i32_0 = arith.constant 0 : i32
    %c0_i32_1 = arith.constant 0 : i32
    return %c0_i32, %c0_i32_0 : i32, i32
  }
  func.func @transform_2(%arg0: i32) -> (i32, i32) {
    %c0_i32 = arith.constant 0 : i32
    %c0_i32_0 = arith.constant 0 : i32
    %c0_i32_1 = arith.constant 0 : i32
    return %c0_i32, %c0_i32_0 : i32, i32
  }
  func.func @transform_3(%arg0: i32) -> (i32, i32) {
    %c0_i32 = arith.constant 0 : i32
    %c0_i32_0 = arith.constant 0 : i32
    return %arg0, %c0_i32 : i32, i32
  }
}

module attributes {stable_mosaic.version = 11 : i64} {
  func.func @_ln_qkv_kernel(%arg0: i32, %arg1: memref<24x32xbf16, #tpu.memory_space<vmem>>, %arg2: memref<1x32xf32, #tpu.memory_space<vmem>>, %arg3: memref<1x32xf32, #tpu.memory_space<vmem>>, %arg4: memref<32x96xbf16, #tpu.memory_space<vmem>>, %arg5: memref<1x96xf32, #tpu.memory_space<vmem>>, %arg6: memref<24x96xbf16, #tpu.memory_space<vmem>>) attributes {dimension_semantics = [#tpu.dimension_semantics<parallel>], iteration_bounds = array<i64: 1>, scalar_prefetch = 0 : i64, scratch_operands = 0 : i64, tpu.core_type = #tpu.core_type<tc>, window_params = [{transform_indices = @transform_0, window_bounds = array<i64: 24, 32>}, {pipeline_mode = #tpu.pipeline_mode<synchronous>, transform_indices = @transform_1, window_bounds = array<i64: 1, 32>}, {pipeline_mode = #tpu.pipeline_mode<synchronous>, transform_indices = @transform_2, window_bounds = array<i64: 1, 32>}, {pipeline_mode = #tpu.pipeline_mode<synchronous>, transform_indices = @transform_3, window_bounds = array<i64: 32, 96>}, {pipeline_mode = #tpu.pipeline_mode<synchronous>, transform_indices = @transform_4, window_bounds = array<i64: 1, 96>}, {transform_indices = @transform_5, window_bounds = array<i64: 24, 96>}]} {
    %c0 = arith.constant 0 : index
    %c0_0 = arith.constant 0 : index
    %0 = vector.load %arg1[%c0, %c0_0] : memref<24x32xbf16, #tpu.memory_space<vmem>>, vector<24x32xbf16>
    %1 = arith.extf %0 : vector<24x32xbf16> to vector<24x32xf32>
    %c0_1 = arith.constant 0 : index
    %c0_2 = arith.constant 0 : index
    %2 = vector.load %arg2[%c0_1, %c0_2] : memref<1x32xf32, #tpu.memory_space<vmem>>, vector<1x32xf32>
    %c0_3 = arith.constant 0 : index
    %c0_4 = arith.constant 0 : index
    %3 = vector.load %arg3[%c0_3, %c0_4] : memref<1x32xf32, #tpu.memory_space<vmem>>, vector<1x32xf32>
    %cst = arith.constant dense<0.000000e+00> : vector<24xf32>
    %4 = vector.multi_reduction <add>, %1, %cst [1] : vector<24x32xf32> to vector<24xf32>
    %5 = vector.shape_cast %4 : vector<24xf32> to vector<24x1xf32>
    %cst_5 = arith.constant 3.200000e+01 : f32
    %6 = vector.broadcast %cst_5 : f32 to vector<24x1xf32>
    %7 = arith.divf %5, %6 : vector<24x1xf32>
    %8 = vector.broadcast %7 : vector<24x1xf32> to vector<24x32xf32>
    %9 = arith.subf %1, %8 : vector<24x32xf32>
    %10 = arith.mulf %9, %9 : vector<24x32xf32>
    %cst_6 = arith.constant dense<0.000000e+00> : vector<24xf32>
    %11 = vector.multi_reduction <add>, %10, %cst_6 [1] : vector<24x32xf32> to vector<24xf32>
    %12 = vector.shape_cast %11 : vector<24xf32> to vector<24x1xf32>
    %cst_7 = arith.constant 3.200000e+01 : f32
    %13 = vector.broadcast %cst_7 : f32 to vector<24x1xf32>
    %14 = arith.divf %12, %13 : vector<24x1xf32>
    %15 = vector.broadcast %7 : vector<24x1xf32> to vector<24x32xf32>
    %16 = arith.subf %1, %15 : vector<24x32xf32>
    %cst_8 = arith.constant 9.99999997E-7 : f32
    %17 = vector.broadcast %cst_8 : f32 to vector<24x1xf32>
    %18 = arith.addf %14, %17 : vector<24x1xf32>
    %19 = math.rsqrt %18 : vector<24x1xf32>
    %20 = vector.broadcast %19 : vector<24x1xf32> to vector<24x32xf32>
    %21 = arith.mulf %16, %20 : vector<24x32xf32>
    %22 = vector.broadcast %2 : vector<1x32xf32> to vector<24x32xf32>
    %23 = arith.mulf %21, %22 : vector<24x32xf32>
    %24 = vector.broadcast %3 : vector<1x32xf32> to vector<24x32xf32>
    %25 = arith.addf %23, %24 : vector<24x32xf32>
    %26 = arith.truncf %25 : vector<24x32xf32> to vector<24x32xbf16>
    %c0_9 = arith.constant 0 : index
    %c0_10 = arith.constant 0 : index
    %27 = vector.load %arg4[%c0_9, %c0_10] : memref<32x96xbf16, #tpu.memory_space<vmem>>, vector<32x96xbf16>
    %cst_11 = arith.constant dense<0.000000e+00> : vector<24x96xf32>
    %28 = tpu.matmul %26, %27, %cst_11 {dimension_numbers = #tpu.dot_dimension_numbers<[1], [0], [0], [1], [0, 0, 1, 1], [], []>} : vector<24x32xbf16>, vector<32x96xbf16>, vector<24x96xf32> -> vector<24x96xf32>
    %c0_12 = arith.constant 0 : index
    %c0_13 = arith.constant 0 : index
    %29 = vector.load %arg5[%c0_12, %c0_13] : memref<1x96xf32, #tpu.memory_space<vmem>>, vector<1x96xf32>
    %30 = vector.broadcast %29 : vector<1x96xf32> to vector<24x96xf32>
    %31 = arith.addf %28, %30 : vector<24x96xf32>
    %32 = arith.truncf %31 : vector<24x96xf32> to vector<24x96xbf16>
    %c0_14 = arith.constant 0 : index
    %c0_15 = arith.constant 0 : index
    %33 = vector.load %arg6[%c0_14, %c0_15] : memref<24x96xbf16, #tpu.memory_space<vmem>>, vector<24x96xbf16>
    tpu.vector_store %arg6[%c0_14, %c0_15], %32 {strides = array<i32>} : memref<24x96xbf16, #tpu.memory_space<vmem>>, vector<24x96xbf16>,
    return
  }
  func.func @transform_0(%arg0: i32) -> (i32, i32) {
    %c0_i32 = arith.constant 0 : i32
    %c0_i32_0 = arith.constant 0 : i32
    return %arg0, %c0_i32 : i32, i32
  }
  func.func @transform_1(%arg0: i32) -> (i32, i32) {
    %c0_i32 = arith.constant 0 : i32
    %c0_i32_0 = arith.constant 0 : i32
    %c0_i32_1 = arith.constant 0 : i32
    return %c0_i32, %c0_i32_0 : i32, i32
  }
  func.func @transform_2(%arg0: i32) -> (i32, i32) {
    %c0_i32 = arith.constant 0 : i32
    %c0_i32_0 = arith.constant 0 : i32
    %c0_i32_1 = arith.constant 0 : i32
    return %c0_i32, %c0_i32_0 : i32, i32
  }
  func.func @transform_3(%arg0: i32) -> (i32, i32) {
    %c0_i32 = arith.constant 0 : i32
    %c0_i32_0 = arith.constant 0 : i32
    %c0_i32_1 = arith.constant 0 : i32
    return %c0_i32, %c0_i32_0 : i32, i32
  }
  func.func @transform_4(%arg0: i32) -> (i32, i32) {
    %c0_i32 = arith.constant 0 : i32
    %c0_i32_0 = arith.constant 0 : i32
    %c0_i32_1 = arith.constant 0 : i32
    return %c0_i32, %c0_i32_0 : i32, i32
  }
  func.func @transform_5(%arg0: i32) -> (i32, i32) {
    %c0_i32 = arith.constant 0 : i32
    %c0_i32_0 = arith.constant 0 : i32
    return %arg0, %c0_i32 : i32, i32
  }
}

module attributes {stable_mosaic.version = 11 : i64} {
  func.func @_attn_core_kernel(%arg0: i32, %arg1: i32, %arg2: memref<1x16x8xbf16, #tpu.memory_space<vmem>>, %arg3: memref<1x9x8xbf16, #tpu.memory_space<vmem>>, %arg4: memref<1x9x8xbf16, #tpu.memory_space<vmem>>, %arg5: memref<1x16x8xbf16, #tpu.memory_space<vmem>>) attributes {dimension_semantics = [#tpu.dimension_semantics<parallel>, #tpu.dimension_semantics<parallel>], iteration_bounds = array<i64: 8, 1>, scalar_prefetch = 0 : i64, scratch_operands = 0 : i64, tpu.core_type = #tpu.core_type<tc>, window_params = [{transform_indices = @transform_0, window_bounds = array<i64: 1, 16, 8>}, {transform_indices = @transform_1, window_bounds = array<i64: 1, 9, 8>}, {transform_indices = @transform_2, window_bounds = array<i64: 1, 9, 8>}, {transform_indices = @transform_3, window_bounds = array<i64: 1, 16, 8>}]} {
    %c0 = arith.constant 0 : index
    %c0_0 = arith.constant 0 : index
    %c0_1 = arith.constant 0 : index
    %0 = vector.load %arg2[%c0, %c0_0, %c0_1] : memref<1x16x8xbf16, #tpu.memory_space<vmem>>, vector<1x16x8xbf16>
    %1 = vector.shape_cast %0 : vector<1x16x8xbf16> to vector<16x8xbf16>
    %c0_2 = arith.constant 0 : index
    %c0_3 = arith.constant 0 : index
    %c0_4 = arith.constant 0 : index
    %2 = vector.load %arg3[%c0_2, %c0_3, %c0_4] : memref<1x9x8xbf16, #tpu.memory_space<vmem>>, vector<1x9x8xbf16>
    %3 = vector.shape_cast %2 : vector<1x9x8xbf16> to vector<9x8xbf16>
    %cst = arith.constant dense<0.000000e+00> : vector<16x9xf32>
    %4 = tpu.matmul %1, %3, %cst {dimension_numbers = #tpu.dot_dimension_numbers<[1], [1], [0], [0], [0, 0, 1, 0], [], []>} : vector<16x8xbf16>, vector<9x8xbf16>, vector<16x9xf32> -> vector<16x9xf32>
    %cst_5 = arith.constant 0.353553385 : f32
    %5 = vector.broadcast %cst_5 : f32 to vector<16x9xf32>
    %6 = arith.mulf %4, %5 : vector<16x9xf32>
    %cst_6 = arith.constant dense<0xFF800000> : vector<16xf32>
    %7 = vector.multi_reduction <maximumf>, %6, %cst_6 [1] : vector<16x9xf32> to vector<16xf32>
    %8 = vector.shape_cast %7 : vector<16xf32> to vector<16x1xf32>
    %9 = vector.broadcast %8 : vector<16x1xf32> to vector<16x9xf32>
    %10 = arith.subf %6, %9 : vector<16x9xf32>
    %11 = math.exp %10 : vector<16x9xf32>
    %cst_7 = arith.constant dense<0.000000e+00> : vector<16xf32>
    %12 = vector.multi_reduction <add>, %11, %cst_7 [1] : vector<16x9xf32> to vector<16xf32>
    %13 = vector.shape_cast %12 : vector<16xf32> to vector<16x1xf32>
    %14 = tpu.reciprocal %13 {approx = true} : vector<16x1xf32> -> vector<16x1xf32>
    %15 = vector.broadcast %14 : vector<16x1xf32> to vector<16x9xf32>
    %16 = arith.mulf %11, %15 : vector<16x9xf32>
    %17 = arith.truncf %16 : vector<16x9xf32> to vector<16x9xbf16>
    %c0_8 = arith.constant 0 : index
    %c0_9 = arith.constant 0 : index
    %c0_10 = arith.constant 0 : index
    %18 = vector.load %arg4[%c0_8, %c0_9, %c0_10] : memref<1x9x8xbf16, #tpu.memory_space<vmem>>, vector<1x9x8xbf16>
    %19 = vector.shape_cast %18 : vector<1x9x8xbf16> to vector<9x8xbf16>
    %cst_11 = arith.constant dense<0.000000e+00> : vector<16x8xf32>
    %20 = tpu.matmul %17, %19, %cst_11 {dimension_numbers = #tpu.dot_dimension_numbers<[1], [0], [0], [1], [0, 0, 1, 1], [], []>} : vector<16x9xbf16>, vector<9x8xbf16>, vector<16x8xf32> -> vector<16x8xf32>
    %21 = arith.truncf %20 : vector<16x8xf32> to vector<16x8xbf16>
    %c0_12 = arith.constant 0 : index
    %c0_13 = arith.constant 0 : index
    %c0_14 = arith.constant 0 : index
    %22 = vector.load %arg5[%c0_12, %c0_13, %c0_14] : memref<1x16x8xbf16, #tpu.memory_space<vmem>>, vector<1x16x8xbf16>
    %23 = vector.shape_cast %22 : vector<1x16x8xbf16> to vector<16x8xbf16>
    %24 = vector.shape_cast %21 : vector<16x8xbf16> to vector<1x16x8xbf16>
    tpu.vector_store %arg5[%c0_12, %c0_13, %c0_14], %24 {strides = array<i32>} : memref<1x16x8xbf16, #tpu.memory_space<vmem>>, vector<1x16x8xbf16>,
    return
  }
  func.func @transform_0(%arg0: i32, %arg1: i32) -> (i32, i32, i32) {
    %c0_i32 = arith.constant 0 : i32
    %c0_i32_0 = arith.constant 0 : i32
    return %arg0, %arg1, %c0_i32 : i32, i32, i32
  }
  func.func @transform_1(%arg0: i32, %arg1: i32) -> (i32, i32, i32) {
    %c0_i32 = arith.constant 0 : i32
    %c0_i32_0 = arith.constant 0 : i32
    %c0_i32_1 = arith.constant 0 : i32
    return %arg0, %c0_i32, %c0_i32_0 : i32, i32, i32
  }
  func.func @transform_2(%arg0: i32, %arg1: i32) -> (i32, i32, i32) {
    %c0_i32 = arith.constant 0 : i32
    %c0_i32_0 = arith.constant 0 : i32
    %c0_i32_1 = arith.constant 0 : i32
    return %arg0, %c0_i32, %c0_i32_0 : i32, i32, i32
  }
  func.func @transform_3(%arg0: i32, %arg1: i32) -> (i32, i32, i32) {
    %c0_i32 = arith.constant 0 : i32
    %c0_i32_0 = arith.constant 0 : i32
    return %arg0, %arg1, %c0_i32 : i32, i32, i32
  }
}

module attributes {stable_mosaic.version = 11 : i64} {
  func.func @_proj_mlp_kernel(%arg0: i32, %arg1: memref<24x32xbf16, #tpu.memory_space<vmem>>, %arg2: memref<24x32xbf16, #tpu.memory_space<vmem>>, %arg3: memref<32x32xbf16, #tpu.memory_space<vmem>>, %arg4: memref<1x32xf32, #tpu.memory_space<vmem>>, %arg5: memref<1x32xf32, #tpu.memory_space<vmem>>, %arg6: memref<1x32xf32, #tpu.memory_space<vmem>>, %arg7: memref<32x128xbf16, #tpu.memory_space<vmem>>, %arg8: memref<1x128xf32, #tpu.memory_space<vmem>>, %arg9: memref<128x32xbf16, #tpu.memory_space<vmem>>, %arg10: memref<1x32xf32, #tpu.memory_space<vmem>>, %arg11: memref<24x32xbf16, #tpu.memory_space<vmem>>) attributes {dimension_semantics = [#tpu.dimension_semantics<parallel>], iteration_bounds = array<i64: 1>, scalar_prefetch = 0 : i64, scratch_operands = 0 : i64, tpu.core_type = #tpu.core_type<tc>, window_params = [{transform_indices = @transform_0, window_bounds = array<i64: 24, 32>}, {transform_indices = @transform_1, window_bounds = array<i64: 24, 32>}, {pipeline_mode = #tpu.pipeline_mode<synchronous>, transform_indices = @transform_2, window_bounds = array<i64: 32, 32>}, {pipeline_mode = #tpu.pipeline_mode<synchronous>, transform_indices = @transform_3, window_bounds = array<i64: 1, 32>}, {pipeline_mode = #tpu.pipeline_mode<synchronous>, transform_indices = @transform_4, window_bounds = array<i64: 1, 32>}, {pipeline_mode = #tpu.pipeline_mode<synchronous>, transform_indices = @transform_5, window_bounds = array<i64: 1, 32>}, {pipeline_mode = #tpu.pipeline_mode<synchronous>, transform_indices = @transform_6, window_bounds = array<i64: 32, 128>}, {pipeline_mode = #tpu.pipeline_mode<synchronous>, transform_indices = @transform_7, window_bounds = array<i64: 1, 128>}, {pipeline_mode = #tpu.pipeline_mode<synchronous>, transform_indices = @transform_8, window_bounds = array<i64: 128, 32>}, {pipeline_mode = #tpu.pipeline_mode<synchronous>, transform_indices = @transform_9, window_bounds = array<i64: 1, 32>}, {transform_indices = @transform_10, window_bounds = array<i64: 24, 32>}]} {
    %c0 = arith.constant 0 : index
    %c0_0 = arith.constant 0 : index
    %0 = vector.load %arg2[%c0, %c0_0] : memref<24x32xbf16, #tpu.memory_space<vmem>>, vector<24x32xbf16>
    %1 = arith.extf %0 : vector<24x32xbf16> to vector<24x32xf32>
    %c0_1 = arith.constant 0 : index
    %c0_2 = arith.constant 0 : index
    %2 = vector.load %arg1[%c0_1, %c0_2] : memref<24x32xbf16, #tpu.memory_space<vmem>>, vector<24x32xbf16>
    %c0_3 = arith.constant 0 : index
    %c0_4 = arith.constant 0 : index
    %3 = vector.load %arg3[%c0_3, %c0_4] : memref<32x32xbf16, #tpu.memory_space<vmem>>, vector<32x32xbf16>
    %cst = arith.constant dense<0.000000e+00> : vector<24x32xf32>
    %4 = tpu.matmul %2, %3, %cst {dimension_numbers = #tpu.dot_dimension_numbers<[1], [0], [0], [1], [0, 0, 1, 1], [], []>} : vector<24x32xbf16>, vector<32x32xbf16>, vector<24x32xf32> -> vector<24x32xf32>
    %c0_5 = arith.constant 0 : index
    %c0_6 = arith.constant 0 : index
    %5 = vector.load %arg4[%c0_5, %c0_6] : memref<1x32xf32, #tpu.memory_space<vmem>>, vector<1x32xf32>
    %6 = vector.broadcast %5 : vector<1x32xf32> to vector<24x32xf32>
    %7 = arith.addf %4, %6 : vector<24x32xf32>
    %8 = arith.addf %1, %7 : vector<24x32xf32>
    %c0_7 = arith.constant 0 : index
    %c0_8 = arith.constant 0 : index
    %9 = vector.load %arg5[%c0_7, %c0_8] : memref<1x32xf32, #tpu.memory_space<vmem>>, vector<1x32xf32>
    %c0_9 = arith.constant 0 : index
    %c0_10 = arith.constant 0 : index
    %10 = vector.load %arg6[%c0_9, %c0_10] : memref<1x32xf32, #tpu.memory_space<vmem>>, vector<1x32xf32>
    %cst_11 = arith.constant dense<0.000000e+00> : vector<24xf32>
    %11 = vector.multi_reduction <add>, %8, %cst_11 [1] : vector<24x32xf32> to vector<24xf32>
    %12 = vector.shape_cast %11 : vector<24xf32> to vector<24x1xf32>
    %cst_12 = arith.constant 3.200000e+01 : f32
    %13 = vector.broadcast %cst_12 : f32 to vector<24x1xf32>
    %14 = arith.divf %12, %13 : vector<24x1xf32>
    %15 = vector.broadcast %14 : vector<24x1xf32> to vector<24x32xf32>
    %16 = arith.subf %8, %15 : vector<24x32xf32>
    %17 = arith.mulf %16, %16 : vector<24x32xf32>
    %cst_13 = arith.constant dense<0.000000e+00> : vector<24xf32>
    %18 = vector.multi_reduction <add>, %17, %cst_13 [1] : vector<24x32xf32> to vector<24xf32>
    %19 = vector.shape_cast %18 : vector<24xf32> to vector<24x1xf32>
    %cst_14 = arith.constant 3.200000e+01 : f32
    %20 = vector.broadcast %cst_14 : f32 to vector<24x1xf32>
    %21 = arith.divf %19, %20 : vector<24x1xf32>
    %22 = vector.broadcast %14 : vector<24x1xf32> to vector<24x32xf32>
    %23 = arith.subf %8, %22 : vector<24x32xf32>
    %cst_15 = arith.constant 9.99999997E-7 : f32
    %24 = vector.broadcast %cst_15 : f32 to vector<24x1xf32>
    %25 = arith.addf %21, %24 : vector<24x1xf32>
    %26 = math.rsqrt %25 : vector<24x1xf32>
    %27 = vector.broadcast %26 : vector<24x1xf32> to vector<24x32xf32>
    %28 = arith.mulf %23, %27 : vector<24x32xf32>
    %29 = vector.broadcast %9 : vector<1x32xf32> to vector<24x32xf32>
    %30 = arith.mulf %28, %29 : vector<24x32xf32>
    %31 = vector.broadcast %10 : vector<1x32xf32> to vector<24x32xf32>
    %32 = arith.addf %30, %31 : vector<24x32xf32>
    %33 = arith.truncf %32 : vector<24x32xf32> to vector<24x32xbf16>
    %c0_16 = arith.constant 0 : index
    %c0_17 = arith.constant 0 : index
    %34 = vector.load %arg7[%c0_16, %c0_17] : memref<32x128xbf16, #tpu.memory_space<vmem>>, vector<32x128xbf16>
    %cst_18 = arith.constant dense<0.000000e+00> : vector<24x128xf32>
    %35 = tpu.matmul %33, %34, %cst_18 {dimension_numbers = #tpu.dot_dimension_numbers<[1], [0], [0], [1], [0, 0, 1, 1], [], []>} : vector<24x32xbf16>, vector<32x128xbf16>, vector<24x128xf32> -> vector<24x128xf32>
    %c0_19 = arith.constant 0 : index
    %c0_20 = arith.constant 0 : index
    %36 = vector.load %arg8[%c0_19, %c0_20] : memref<1x128xf32, #tpu.memory_space<vmem>>, vector<1x128xf32>
    %37 = vector.broadcast %36 : vector<1x128xf32> to vector<24x128xf32>
    %38 = arith.addf %35, %37 : vector<24x128xf32>
    %39 = arith.mulf %38, %38 : vector<24x128xf32>
    %40 = arith.mulf %38, %39 : vector<24x128xf32>
    %cst_21 = arith.constant 4.471500e-02 : f32
    %41 = vector.broadcast %cst_21 : f32 to vector<24x128xf32>
    %42 = arith.mulf %41, %40 : vector<24x128xf32>
    %43 = arith.addf %38, %42 : vector<24x128xf32>
    %cst_22 = arith.constant 0.797884583 : f32
    %44 = vector.broadcast %cst_22 : f32 to vector<24x128xf32>
    %45 = arith.mulf %44, %43 : vector<24x128xf32>
    %46 = math.tanh %45 : vector<24x128xf32>
    %cst_23 = arith.constant 1.000000e+00 : f32
    %47 = vector.broadcast %cst_23 : f32 to vector<24x128xf32>
    %48 = arith.addf %47, %46 : vector<24x128xf32>
    %cst_24 = arith.constant 5.000000e-01 : f32
    %49 = vector.broadcast %cst_24 : f32 to vector<24x128xf32>
    %50 = arith.mulf %49, %48 : vector<24x128xf32>
    %51 = arith.mulf %38, %50 : vector<24x128xf32>
    %52 = arith.truncf %51 : vector<24x128xf32> to vector<24x128xbf16>
    %c0_25 = arith.constant 0 : index
    %c0_26 = arith.constant 0 : index
    %53 = vector.load %arg9[%c0_25, %c0_26] : memref<128x32xbf16, #tpu.memory_space<vmem>>, vector<128x32xbf16>
    %cst_27 = arith.constant dense<0.000000e+00> : vector<24x32xf32>
    %54 = tpu.matmul %52, %53, %cst_27 {dimension_numbers = #tpu.dot_dimension_numbers<[1], [0], [0], [1], [0, 0, 1, 1], [], []>} : vector<24x128xbf16>, vector<128x32xbf16>, vector<24x32xf32> -> vector<24x32xf32>
    %c0_28 = arith.constant 0 : index
    %c0_29 = arith.constant 0 : index
    %55 = vector.load %arg10[%c0_28, %c0_29] : memref<1x32xf32, #tpu.memory_space<vmem>>, vector<1x32xf32>
    %56 = vector.broadcast %55 : vector<1x32xf32> to vector<24x32xf32>
    %57 = arith.addf %54, %56 : vector<24x32xf32>
    %58 = arith.addf %8, %57 : vector<24x32xf32>
    %59 = arith.truncf %58 : vector<24x32xf32> to vector<24x32xbf16>
    %c0_30 = arith.constant 0 : index
    %c0_31 = arith.constant 0 : index
    %60 = vector.load %arg11[%c0_30, %c0_31] : memref<24x32xbf16, #tpu.memory_space<vmem>>, vector<24x32xbf16>
    tpu.vector_store %arg11[%c0_30, %c0_31], %59 {strides = array<i32>} : memref<24x32xbf16, #tpu.memory_space<vmem>>, vector<24x32xbf16>,
    return
  }
  func.func @transform_0(%arg0: i32) -> (i32, i32) {
    %c0_i32 = arith.constant 0 : i32
    %c0_i32_0 = arith.constant 0 : i32
    return %arg0, %c0_i32 : i32, i32
  }
  func.func @transform_1(%arg0: i32) -> (i32, i32) {
    %c0_i32 = arith.constant 0 : i32
    %c0_i32_0 = arith.constant 0 : i32
    return %arg0, %c0_i32 : i32, i32
  }
  func.func @transform_2(%arg0: i32) -> (i32, i32) {
    %c0_i32 = arith.constant 0 : i32
    %c0_i32_0 = arith.constant 0 : i32
    %c0_i32_1 = arith.constant 0 : i32
    return %c0_i32, %c0_i32_0 : i32, i32
  }
  func.func @transform_3(%arg0: i32) -> (i32, i32) {
    %c0_i32 = arith.constant 0 : i32
    %c0_i32_0 = arith.constant 0 : i32
    %c0_i32_1 = arith.constant 0 : i32
    return %c0_i32, %c0_i32_0 : i32, i32
  }
  func.func @transform_4(%arg0: i32) -> (i32, i32) {
    %c0_i32 = arith.constant 0 : i32
    %c0_i32_0 = arith.constant 0 : i32
    %c0_i32_1 = arith.constant 0 : i32
    return %c0_i32, %c0_i32_0 : i32, i32
  }
  func.func @transform_5(%arg0: i32) -> (i32, i32) {
    %c0_i32 = arith.constant 0 : i32
    %c0_i32_0 = arith.constant 0 : i32
    %c0_i32_1 = arith.constant 0 : i32
    return %c0_i32, %c0_i32_0 : i32, i32
  }
  func.func @transform_6(%arg0: i32) -> (i32, i32) {
    %c0_i32 = arith.constant 0 : i32
    %c0_i32_0 = arith.constant 0 : i32
    %c0_i32_1 = arith.constant 0 : i32
    return %c0_i32, %c0_i32_0 : i32, i32
  }
  func.func @transform_7(%arg0: i32) -> (i32, i32) {
    %c0_i32 = arith.constant 0 : i32
    %c0_i32_0 = arith.constant 0 : i32
    %c0_i32_1 = arith.constant 0 : i32
    return %c0_i32, %c0_i32_0 : i32, i32
  }
  func.func @transform_8(%arg0: i32) -> (i32, i32) {
    %c0_i32 = arith.constant 0 : i32
    %c0_i32_0 = arith.constant 0 : i32
    %c0_i32_1 = arith.constant 0 : i32
    return %c0_i32, %c0_i32_0 : i32, i32
  }
  func.func @transform_9(%arg0: i32) -> (i32, i32) {
    %c0_i32 = arith.constant 0 : i32
    %c0_i32_0 = arith.constant 0 : i32
    %c0_i32_1 = arith.constant 0 : i32
    return %c0_i32, %c0_i32_0 : i32, i32
  }
  func.func @transform_10(%arg0: i32) -> (i32, i32) {
    %c0_i32 = arith.constant 0 : i32
    %c0_i32_0 = arith.constant 0 : i32
    return %arg0, %c0_i32 : i32, i32
  }
}

module attributes {stable_mosaic.version = 11 : i64} {
  func.func @_final_head_kernel(%arg0: i32, %arg1: memref<8x32xbf16, #tpu.memory_space<vmem>>, %arg2: memref<8x32xf32, #tpu.memory_space<vmem>>, %arg3: memref<1x32xf32, #tpu.memory_space<vmem>>, %arg4: memref<1x32xf32, #tpu.memory_space<vmem>>, %arg5: memref<1x1xf32, #tpu.memory_space<vmem>>, %arg6: memref<32x10xbf16, #tpu.memory_space<vmem>>, %arg7: memref<1x10xf32, #tpu.memory_space<vmem>>, %arg8: memref<8x10xf32, #tpu.memory_space<vmem>>) attributes {dimension_semantics = [#tpu.dimension_semantics<parallel>], iteration_bounds = array<i64: 1>, scalar_prefetch = 0 : i64, scratch_operands = 0 : i64, tpu.core_type = #tpu.core_type<tc>, window_params = [{transform_indices = @transform_0, window_bounds = array<i64: 8, 32>}, {transform_indices = @transform_1, window_bounds = array<i64: 8, 32>}, {pipeline_mode = #tpu.pipeline_mode<synchronous>, transform_indices = @transform_2, window_bounds = array<i64: 1, 32>}, {pipeline_mode = #tpu.pipeline_mode<synchronous>, transform_indices = @transform_3, window_bounds = array<i64: 1, 32>}, {pipeline_mode = #tpu.pipeline_mode<synchronous>, transform_indices = @transform_4, window_bounds = array<i64: 1, 1>}, {pipeline_mode = #tpu.pipeline_mode<synchronous>, transform_indices = @transform_5, window_bounds = array<i64: 32, 10>}, {pipeline_mode = #tpu.pipeline_mode<synchronous>, transform_indices = @transform_6, window_bounds = array<i64: 1, 10>}, {transform_indices = @transform_7, window_bounds = array<i64: 8, 10>}]} {
    %c0 = arith.constant 0 : index
    %c0_0 = arith.constant 0 : index
    %0 = vector.load %arg1[%c0, %c0_0] : memref<8x32xbf16, #tpu.memory_space<vmem>>, vector<8x32xbf16>
    %1 = arith.extf %0 : vector<8x32xbf16> to vector<8x32xf32>
    %c0_1 = arith.constant 0 : index
    %c0_2 = arith.constant 0 : index
    %2 = vector.load %arg3[%c0_1, %c0_2] : memref<1x32xf32, #tpu.memory_space<vmem>>, vector<1x32xf32>
    %c0_3 = arith.constant 0 : index
    %c0_4 = arith.constant 0 : index
    %3 = vector.load %arg4[%c0_3, %c0_4] : memref<1x32xf32, #tpu.memory_space<vmem>>, vector<1x32xf32>
    %cst = arith.constant dense<0.000000e+00> : vector<8xf32>
    %4 = vector.multi_reduction <add>, %1, %cst [1] : vector<8x32xf32> to vector<8xf32>
    %5 = vector.shape_cast %4 : vector<8xf32> to vector<8x1xf32>
    %cst_5 = arith.constant 3.200000e+01 : f32
    %6 = vector.broadcast %cst_5 : f32 to vector<8x1xf32>
    %7 = arith.divf %5, %6 : vector<8x1xf32>
    %8 = vector.broadcast %7 : vector<8x1xf32> to vector<8x32xf32>
    %9 = arith.subf %1, %8 : vector<8x32xf32>
    %10 = arith.mulf %9, %9 : vector<8x32xf32>
    %cst_6 = arith.constant dense<0.000000e+00> : vector<8xf32>
    %11 = vector.multi_reduction <add>, %10, %cst_6 [1] : vector<8x32xf32> to vector<8xf32>
    %12 = vector.shape_cast %11 : vector<8xf32> to vector<8x1xf32>
    %cst_7 = arith.constant 3.200000e+01 : f32
    %13 = vector.broadcast %cst_7 : f32 to vector<8x1xf32>
    %14 = arith.divf %12, %13 : vector<8x1xf32>
    %15 = vector.broadcast %7 : vector<8x1xf32> to vector<8x32xf32>
    %16 = arith.subf %1, %15 : vector<8x32xf32>
    %cst_8 = arith.constant 9.99999997E-7 : f32
    %17 = vector.broadcast %cst_8 : f32 to vector<8x1xf32>
    %18 = arith.addf %14, %17 : vector<8x1xf32>
    %19 = math.rsqrt %18 : vector<8x1xf32>
    %20 = vector.broadcast %19 : vector<8x1xf32> to vector<8x32xf32>
    %21 = arith.mulf %16, %20 : vector<8x32xf32>
    %22 = vector.broadcast %2 : vector<1x32xf32> to vector<8x32xf32>
    %23 = arith.mulf %21, %22 : vector<8x32xf32>
    %24 = vector.broadcast %3 : vector<1x32xf32> to vector<8x32xf32>
    %25 = arith.addf %23, %24 : vector<8x32xf32>
    %c0_9 = arith.constant 0 : index
    %c0_10 = arith.constant 0 : index
    %26 = vector.load %arg5[%c0_9, %c0_10] : memref<1x1xf32, #tpu.memory_space<vmem>>, vector<1x1xf32>
    %27 = arith.negf %26 : vector<1x1xf32>
    %28 = math.exp %27 : vector<1x1xf32>
    %cst_11 = arith.constant 1.000000e+00 : f32
    %29 = vector.broadcast %cst_11 : f32 to vector<1x1xf32>
    %30 = arith.addf %29, %28 : vector<1x1xf32>
    %31 = arith.divf %29, %30 : vector<1x1xf32>
    %32 = vector.broadcast %31 : vector<1x1xf32> to vector<8x32xf32>
    %33 = arith.mulf %32, %25 : vector<8x32xf32>
    %cst_12 = arith.constant 1.000000e+00 : f32
    %34 = vector.broadcast %cst_12 : f32 to vector<1x1xf32>
    %35 = arith.subf %34, %31 : vector<1x1xf32>
    %c0_13 = arith.constant 0 : index
    %c0_14 = arith.constant 0 : index
    %36 = vector.load %arg2[%c0_13, %c0_14] : memref<8x32xf32, #tpu.memory_space<vmem>>, vector<8x32xf32>
    %37 = vector.broadcast %35 : vector<1x1xf32> to vector<8x32xf32>
    %38 = arith.mulf %37, %36 : vector<8x32xf32>
    %39 = arith.addf %33, %38 : vector<8x32xf32>
    %40 = arith.truncf %39 : vector<8x32xf32> to vector<8x32xbf16>
    %c0_15 = arith.constant 0 : index
    %c0_16 = arith.constant 0 : index
    %41 = vector.load %arg6[%c0_15, %c0_16] : memref<32x10xbf16, #tpu.memory_space<vmem>>, vector<32x10xbf16>
    %cst_17 = arith.constant dense<0.000000e+00> : vector<8x10xf32>
    %42 = tpu.matmul %40, %41, %cst_17 {dimension_numbers = #tpu.dot_dimension_numbers<[1], [0], [0], [1], [0, 0, 1, 1], [], []>} : vector<8x32xbf16>, vector<32x10xbf16>, vector<8x10xf32> -> vector<8x10xf32>
    %c0_18 = arith.constant 0 : index
    %c0_19 = arith.constant 0 : index
    %43 = vector.load %arg7[%c0_18, %c0_19] : memref<1x10xf32, #tpu.memory_space<vmem>>, vector<1x10xf32>
    %44 = vector.broadcast %43 : vector<1x10xf32> to vector<8x10xf32>
    %45 = arith.addf %42, %44 : vector<8x10xf32>
    %c0_20 = arith.constant 0 : index
    %c0_21 = arith.constant 0 : index
    %46 = vector.load %arg8[%c0_20, %c0_21] : memref<8x10xf32, #tpu.memory_space<vmem>>, vector<8x10xf32>
    tpu.vector_store %arg8[%c0_20, %c0_21], %45 {strides = array<i32>} : memref<8x10xf32, #tpu.memory_space<vmem>>, vector<8x10xf32>,
    return
  }
  func.func @transform_0(%arg0: i32) -> (i32, i32) {
    %c0_i32 = arith.constant 0 : i32
    %c0_i32_0 = arith.constant 0 : i32
    return %arg0, %c0_i32 : i32, i32
  }
  func.func @transform_1(%arg0: i32) -> (i32, i32) {
    %c0_i32 = arith.constant 0 : i32
    %c0_i32_0 = arith.constant 0 : i32
    return %arg0, %c0_i32 : i32, i32
  }
  func.func @transform_2(%arg0: i32) -> (i32, i32) {
    %c0_i32 = arith.constant 0 : i32
    %c0_i32_0 = arith.constant 0 : i32
    %c0_i32_1 = arith.constant 0 : i32
    return %c0_i32, %c0_i32_0 : i32, i32
  }
  func.func @transform_3(%arg0: i32) -> (i32, i32) {
    %c0_i32 = arith.constant 0 : i32
    %c0_i32_0 = arith.constant 0 : i32
    %c0_i32_1 = arith.constant 0 : i32
    return %c0_i32, %c0_i32_0 : i32, i32
  }
  func.func @transform_4(%arg0: i32) -> (i32, i32) {
    %c0_i32 = arith.constant 0 : i32
    %c0_i32_0 = arith.constant 0 : i32
    %c0_i32_1 = arith.constant 0 : i32
    return %c0_i32, %c0_i32_0 : i32, i32
  }
  func.func @transform_5(%arg0: i32) -> (i32, i32) {
    %c0_i32 = arith.constant 0 : i32
    %c0_i32_0 = arith.constant 0 : i32
    %c0_i32_1 = arith.constant 0 : i32
    return %c0_i32, %c0_i32_0 : i32, i32
  }
  func.func @transform_6(%arg0: i32) -> (i32, i32) {
    %c0_i32 = arith.constant 0 : i32
    %c0_i32_0 = arith.constant 0 : i32
    %c0_i32_1 = arith.constant 0 : i32
    return %c0_i32, %c0_i32_0 : i32, i32
  }
  func.func @transform_7(%arg0: i32) -> (i32, i32) {
    %c0_i32 = arith.constant 0 : i32
    %c0_i32_0 = arith.constant 0 : i32
    return %arg0, %c0_i32 : i32, i32
  }
}

module attributes {stable_mosaic.version = 11 : i64} {
  func.func @_linear_nobias_kernel(%arg0: i32, %arg1: memref<8x3xf32, #tpu.memory_space<vmem>>, %arg2: memref<3x32xbf16, #tpu.memory_space<vmem>>, %arg3: memref<8x32xf32, #tpu.memory_space<vmem>>) attributes {dimension_semantics = [#tpu.dimension_semantics<parallel>], iteration_bounds = array<i64: 1>, scalar_prefetch = 0 : i64, scratch_operands = 0 : i64, tpu.core_type = #tpu.core_type<tc>, window_params = [{transform_indices = @transform_0, window_bounds = array<i64: 8, 3>}, {pipeline_mode = #tpu.pipeline_mode<synchronous>, transform_indices = @transform_1, window_bounds = array<i64: 3, 32>}, {transform_indices = @transform_2, window_bounds = array<i64: 8, 32>}]} {
    %c0 = arith.constant 0 : index
    %c0_0 = arith.constant 0 : index
    %0 = vector.load %arg1[%c0, %c0_0] : memref<8x3xf32, #tpu.memory_space<vmem>>, vector<8x3xf32>
    %1 = arith.truncf %0 : vector<8x3xf32> to vector<8x3xbf16>
    %c0_1 = arith.constant 0 : index
    %c0_2 = arith.constant 0 : index
    %2 = vector.load %arg2[%c0_1, %c0_2] : memref<3x32xbf16, #tpu.memory_space<vmem>>, vector<3x32xbf16>
    %cst = arith.constant dense<0.000000e+00> : vector<8x32xf32>
    %3 = tpu.matmul %1, %2, %cst {dimension_numbers = #tpu.dot_dimension_numbers<[1], [0], [0], [1], [0, 0, 1, 1], [], []>} : vector<8x3xbf16>, vector<3x32xbf16>, vector<8x32xf32> -> vector<8x32xf32>
    %c0_3 = arith.constant 0 : index
    %c0_4 = arith.constant 0 : index
    %4 = vector.load %arg3[%c0_3, %c0_4] : memref<8x32xf32, #tpu.memory_space<vmem>>, vector<8x32xf32>
    tpu.vector_store %arg3[%c0_3, %c0_4], %3 {strides = array<i32>} : memref<8x32xf32, #tpu.memory_space<vmem>>, vector<8x32xf32>,
    return
  }
  func.func @transform_0(%arg0: i32) -> (i32, i32) {
    %c0_i32 = arith.constant 0 : i32
    %c0_i32_0 = arith.constant 0 : i32
    return %arg0, %c0_i32 : i32, i32
  }
  func.func @transform_1(%arg0: i32) -> (i32, i32) {
    %c0_i32 = arith.constant 0 : i32
    %c0_i32_0 = arith.constant 0 : i32
    %c0_i32_1 = arith.constant 0 : i32
    return %c0_i32, %c0_i32_0 : i32, i32
  }
  func.func @transform_2(%arg0: i32) -> (i32, i32) {
    %c0_i32 = arith.constant 0 : i32
    %c0_i32_0 = arith.constant 0 : i32
    return %arg0, %c0_i32 : i32, i32
  }
}

</mosaic_0001>

<llo_original>
// kernel: forward.10
$region0: #{forward.10}
  #allocation0 [shape = 'u32[]', space=smem, size = 0x4, offset = 0x4, fixed_abs, tag = 'smem constant byte address 0x4 - core index']
  #allocation1 [shape = 'u32[144,128]{1,0:T(1,128)}', space=vmem, size = 0x12000, scoped, tag = 'internal scratch']
  %s0 = inlined_call_operand.vmem [shape: bf16[16,192], index: 0, kind: input, shape index: {}]
  %s1 = inlined_call_operand.vmem [shape: bf16[192,32], index: 1, kind: input, shape index: {}]
  %s2 = inlined_call_operand.vmem [shape: f32[1,32], index: 2, kind: input, shape index: {}]
  %s3 = inlined_call_operand.vmem [shape: f32[16,32], index: 3, kind: output, shape index: {}]
  %s4 = sld [smem:[#allocation0]]
  $region22: #{forward.10} parent=0
    _
  %s6 = ssub.s32 1, %s4
  %s7 = scalar_select 0, %s6, %s4
  // Predicated region
  $region2: #{forward.10} parent=0 // pred_check
    _
  $region3: #{forward.10} parent=0 // pred_check_branch
    %9 = sbr.rel (0) target = $region5
  $region4: #{forward.10} parent=0 // pred_region
    _
  $region5: #{forward.10} parent=0 // pred_fallthru
    _
  // Predicated region
  $region6: #{forward.10} parent=0 // pred_check
    _
  $region7: #{forward.10} parent=0 // pred_check_branch
    %11 = sbr.rel (0) target = $region9
  $region8: #{forward.10} parent=0 // pred_region
    _
  $region9: #{forward.10} parent=0 // pred_fallthru
    _
  // Predicated region
  $region10: #{forward.10} parent=0 // pred_check
    _
  $region11: #{forward.10} parent=0 // pred_check_branch
    %13 = sbr.rel (0) target = $region13
  $region12: #{forward.10} parent=0 // pred_region
    _
  $region13: #{forward.10} parent=0 // pred_fallthru
    _
  %v15 = vld [vmem:[%s0] sm:$0xff]
  %v16 = vld [vmem:[%s0 + $0x8] sm:$0xff]
  %v17 = vld [vmem:[%s1] sm:$0xf]
  %v18 = vld [vmem:[%s1 + $0x4] sm:$0xf]
  %v19 = vld [vmem:[%s1 + $0x8] sm:$0xf]
  %v20 = vld [vmem:[%s1 + $0xc] sm:$0xf]
  %v21 = vld [vmem:[%s1 + $0x10] sm:$0xf]
  %v22 = vld [vmem:[%s1 + $0x14] sm:$0xf]
  %v23 = vld [vmem:[%s1 + $0x18] sm:$0xf]
  %v24 = vld [vmem:[%s1 + $0x1c] sm:$0xf]
  %v25 = vld [vmem:[%s1 + $0x20] sm:$0xf]
  %v26 = vld [vmem:[%s1 + $0x24] sm:$0xf]
  %v27 = vld [vmem:[%s1 + $0x28] sm:$0xf]
  %v28 = vld [vmem:[%s1 + $0x2c] sm:$0xf]
  %v29 = vld [vmem:[%s1 + $0x30] sm:$0xf]
  %v30 = vld [vmem:[%s1 + $0x34] sm:$0xf]
  %v31 = vld [vmem:[%s1 + $0x38] sm:$0xf]
  %v32 = vld [vmem:[%s1 + $0x3c] sm:$0xf]
  %v33 = vld [vmem:[%s1 + $0x40] sm:$0xf]
  %v34 = vld [vmem:[%s1 + $0x44] sm:$0xf]
  %v35 = vld [vmem:[%s1 + $0x48] sm:$0xf]
  %v36 = vld [vmem:[%s1 + $0x4c] sm:$0xf]
  %v37 = vld [vmem:[%s1 + $0x50] sm:$0xf]
  %v38 = vld [vmem:[%s1 + $0x54] sm:$0xf]
  %v39 = vld [vmem:[%s1 + $0x58] sm:$0xf]
  %v40 = vld [vmem:[%s1 + $0x5c] sm:$0xf]
  %v41 = vld [vmem:[%s2] sm:$0x1]
  %v43 = vlaneseq
  %v44 = vshrl.u32 %v43, 7
  %v45 = vsub.s32 0, %v44
  %v46 = vrot.slane %v41, %v45
  %v50 = vunpack.c.l.b16 %v15
  %v51 = vunpack.c.h.b16 %v15
  %v52 = vunpack.c.l.b16 %v16
  %v53 = vunpack.c.h.b16 %v16
  %v54 = vpack.c.b16 %v52, %v50
  %v55 = vpack.c.b16 %v53, %v51
  %v81 = vunpack.c.l.b16 %v17
  %v82 = vunpack.c.l.b16 %v18
  %v83 = vunpack.c.l.b16 %v19
  %v84 = vunpack.c.l.b16 %v20
  %v85 = vunpack.c.l.b16 %v21
  %v86 = vunpack.c.l.b16 %v22
  %v87 = vunpack.c.l.b16 %v23
  %v88 = vunpack.c.l.b16 %v24
  %v89 = vunpack.c.l.b16 %v25
  %v90 = vunpack.c.l.b16 %v26
  %v91 = vunpack.c.l.b16 %v27
  %v92 = vunpack.c.l.b16 %v28
  %v93 = vunpack.c.l.b16 %v29
  %v94 = vunpack.c.l.b16 %v30
  %v95 = vunpack.c.l.b16 %v31
  %v96 = vunpack.c.l.b16 %v32
  %v97 = vunpack.c.l.b16 %v33
  %v98 = vunpack.c.l.b16 %v34
  %v99 = vunpack.c.l.b16 %v35
  %v100 = vunpack.c.l.b16 %v36
  %v101 = vunpack.c.l.b16 %v37
  %v102 = vunpack.c.l.b16 %v38
  %v103 = vunpack.c.l.b16 %v39
  %v104 = vunpack.c.l.b16 %v40
  %v105 = vpack.c.b16 %v82, %v81
  %v106 = vpack.c.b16 %v84, %v83
  %v107 = vpack.c.b16 %v86, %v85
  %v108 = vpack.c.b16 %v88, %v87
  %v109 = vpack.c.b16 %v90, %v89
  %v110 = vpack.c.b16 %v92, %v91
  %v111 = vpack.c.b16 %v94, %v93
  %v112 = vpack.c.b16 %v96, %v95
  %v113 = vpack.c.b16 %v98, %v97
  %v114 = vpack.c.b16 %v100, %v99
  %v115 = vpack.c.b16 %v102, %v101
  %v116 = vpack.c.b16 %v104, %v103
  %vm129 = vcmask 523264
  %v131 = vsel %vm129, %v55, 0
  %133 = vmatprep.subr.bf16.mxu0 0
  %134 = vmatpush1.bf16.msra.mxu0 %v112
  %135 = vmatprep.subr.bf16.mxu0 0
  %136 = vmatpush1.bf16.msra.mxu0 %v111
  %137 = vmatprep.subr.bf16.mxu0 0
  %138 = vmatpush1.bf16.msra.mxu0 %v110
  %139 = vmatprep.subr.bf16.mxu0 0
  %140 = vmatpush1.bf16.msra.mxu0 %v109
  %141 = vmatprep.subr.bf16.mxu0 0
  %142 = vmatpush1.bf16.msra.mxu0 %v108
  %143 = vmatprep.subr.bf16.mxu0 0
  %144 = vmatpush1.bf16.msra.mxu0 %v107
  %145 = vmatprep.subr.bf16.mxu0 0
  %146 = vmatpush1.bf16.msra.mxu0 %v106
  %147 = vmatprep.subr.bf16.mxu0 0
  %148 = vmatpush1.bf16.msra.mxu0 %v105
  %149 = vmatprep.subr.bf16.mxu0 0
  %150 = vmatpush2.bf16.msra.mxu0 0
  %151 = vmatprep.subr.bf16.mxu0 0
  %152 = vmatpush2.bf16.msra.mxu0 0
  %153 = vmatprep.subr.bf16.mxu0 0
  %154 = vmatpush2.bf16.msra.mxu0 0
  %155 = vmatprep.subr.bf16.mxu0 0
  %156 = vmatpush2.bf16.msra.mxu0 0
  %157 = vmatprep.subr.bf16.mxu0 0
  %158 = vmatpush2.bf16.msra.mxu0 %v116
  %159 = vmatprep.subr.bf16.mxu0 0
  %160 = vmatpush2.bf16.msra.mxu0 %v115
  %161 = vmatprep.subr.bf16.mxu0 0
  %162 = vmatpush2.bf16.msra.mxu0 %v114
  %163 = vmatprep.subr.bf16.mxu0 0
  %164 = vmatpush2.bf16.msra.mxu0 %v113
  %165 = vmatprep.mubr.bf16.mxu0 %v131
  %166 = vmatmul.mubr.bf16.gmra.mxu0 %v54
  %v167 = vpop.f32.mrf.mxu0
  %v168 = vadd.f32 %v46, %v167
  %v169 = vpop.f32.mrf.mxu0
  %v170 = vpop.f32.mrf.mxu0
  %v171 = vadd.f32 %v46, %v170
  %v172 = vpop.f32.mrf.mxu0
  %173 = vdwg.mxu0
  %vm174 = vcmask 261120
  %175 = vst.msk [vmem:[%s3] sm:$0xff] %vm174, %v168
  %176 = vst.msk [vmem:[%s3 + $0x8] sm:$0xff] %vm174, %v171
  // Predicated region
  $region14: #{forward.10} parent=0 // pred_check
    _
  $region15: #{forward.10} parent=0 // pred_check_branch
    %178 = sbr.rel (0) target = $region17
  $region16: #{forward.10} parent=0 // pred_region
    _
  $region17: #{forward.10} parent=0 // pred_fallthru
    _
  // Predicated region
  $region18: #{forward.10} parent=0 // pred_check
    _
  $region19: #{forward.10} parent=0 // pred_check_branch
    %180 = sbr.rel (0) target = $region21
  $region20: #{forward.10} parent=0 // pred_region
    _
  $region21: #{forward.10} parent=0 // pred_fallthru
    _

// kernel: forward.11
$region0: #{forward.11}
  #allocation0 [shape = 'u32[]', space=smem, size = 0x4, offset = 0x4, fixed_abs, tag = 'smem constant byte address 0x4 - core index']
  #allocation1 [shape = 'u32[144,128]{1,0:T(1,128)}', space=vmem, size = 0x12000, scoped, tag = 'internal scratch']
  %s0 = inlined_call_operand.vmem [shape: bf16[24,32], index: 0, kind: input, shape index: {}]
  %s1 = inlined_call_operand.vmem [shape: f32[1,32], index: 1, kind: input, shape index: {}]
  %s2 = inlined_call_operand.vmem [shape: f32[1,32], index: 2, kind: input, shape index: {}]
  %s3 = inlined_call_operand.vmem [shape: bf16[32,96], index: 3, kind: input, shape index: {}]
  %s4 = inlined_call_operand.vmem [shape: f32[1,96], index: 4, kind: input, shape index: {}]
  %s5 = inlined_call_operand.vmem [shape: bf16[24,96], index: 5, kind: output, shape index: {}]
  %s6 = sld [smem:[#allocation0]]
  $region30: #{forward.11} parent=0
    _
  %s8 = ssub.s32 1, %s6
  %s9 = scalar_select 0, %s8, %s6
  // Predicated region
  $region2: #{forward.11} parent=0 // pred_check
    _
  $region3: #{forward.11} parent=0 // pred_check_branch
    %11 = sbr.rel (0) target = $region5
  $region4: #{forward.11} parent=0 // pred_region
    _
  $region5: #{forward.11} parent=0 // pred_fallthru
    _
  // Predicated region
  $region6: #{forward.11} parent=0 // pred_check
    _
  $region7: #{forward.11} parent=0 // pred_check_branch
    %13 = sbr.rel (0) target = $region9
  $region8: #{forward.11} parent=0 // pred_region
    _
  $region9: #{forward.11} parent=0 // pred_fallthru
    _
  // Predicated region
  $region10: #{forward.11} parent=0 // pred_check
    _
  $region11: #{forward.11} parent=0 // pred_check_branch
    %15 = sbr.rel (0) target = $region13
  $region12: #{forward.11} parent=0 // pred_region
    _
  $region13: #{forward.11} parent=0 // pred_fallthru
    _
  // Predicated region
  $region14: #{forward.11} parent=0 // pred_check
    _
  $region15: #{forward.11} parent=0 // pred_check_branch
    %17 = sbr.rel (0) target = $region17
  $region16: #{forward.11} parent=0 // pred_region
    _
  $region17: #{forward.11} parent=0 // pred_fallthru
    _
  // Predicated region
  $region18: #{forward.11} parent=0 // pred_check
    _
  $region19: #{forward.11} parent=0 // pred_check_branch
    %19 = sbr.rel (0) target = $region21
  $region20: #{forward.11} parent=0 // pred_region
    _
  $region21: #{forward.11} parent=0 // pred_fallthru
    _
  %v21 = vld [vmem:[%s0] sm:$0xf]
  %v22 = vld [vmem:[%s0 + $0x4] sm:$0xf]
  %v23 = vld [vmem:[%s0 + $0x8] sm:$0xf]
  %v24 = vunpack.c.l.bf16 %v21
  %v25 = vunpack.c.l.bf16 %v22
  %v26 = vunpack.c.l.bf16 %v23
  %v27 = vld [vmem:[%s1] sm:$0x1]
  %v28 = vld [vmem:[%s2] sm:$0x1]
  %vm29 = vcmask 261120
  %v30 = vsel %vm29, %v24, 0.0
  %31 = vadd.xlane.f32.xlu0 %v30
  %v32 = vpop.xlane.xlu0 %31
  %v33 = vsel %vm29, %v25, 0.0
  %34 = vadd.xlane.f32.xlu0 %v33
  %v35 = vpop.xlane.xlu0 %34
  %v36 = vsel %vm29, %v26, 0.0
  %37 = vadd.xlane.f32.xlu0 %v36
  %v38 = vpop.xlane.xlu0 %37
  %v39 = vrcp.pop 32.0
  %v40 = vmul.f32 %v32, %v39
  %v41 = vmul.f32 %v35, %v39
  %v42 = vmul.f32 %v38, %v39
  %v43 = vsub.f32 %v24, %v40
  %v44 = vsub.f32 %v25, %v41
  %v45 = vsub.f32 %v26, %v42
  %v46 = vmul.f32 %v43, %v43
  %v47 = vmul.f32 %v44, %v44
  %v48 = vmul.f32 %v45, %v45
  %v49 = vsel %vm29, %v46, 0.0
  %50 = vadd.xlane.f32.xlu0 %v49
  %v51 = vpop.xlane.xlu0 %50
  %v52 = vsel %vm29, %v47, 0.0
  %53 = vadd.xlane.f32.xlu0 %v52
  %v54 = vpop.xlane.xlu0 %53
  %v55 = vsel %vm29, %v48, 0.0
  %56 = vadd.xlane.f32.xlu0 %v55
  %v57 = vpop.xlane.xlu0 %56
  %v58 = vmul.f32 %v51, %v39
  %v59 = vmul.f32 %v54, %v39
  %v60 = vmul.f32 %v57, %v39
  %v61 = vadd.f32 %v58, 1e-06
  %v62 = vadd.f32 %v59, 1e-06
  %v63 = vadd.f32 %v60, 1e-06
  %v64 = vrsqrt.pop %v61
  %v65 = vrsqrt.pop %v62
  %v66 = vrsqrt.pop %v63
  %v67 = vmul.f32 %v43, %v64
  %v68 = vmul.f32 %v44, %v65
  %v69 = vmul.f32 %v45, %v66
  %v71 = vlaneseq
  %v72 = vshrl.u32 %v71, 7
  %v73 = vsub.s32 0, %v72
  %v74 = vrot.slane %v27, %v73
  %v76 = vmul.f32 %v67, %v74
  %v77 = vmul.f32 %v68, %v74
  %v78 = vmul.f32 %v69, %v74
  %v80 = vlaneseq
  %v81 = vshrl.u32 %v80, 7
  %v82 = vsub.s32 0, %v81
  %v83 = vrot.slane %v28, %v82
  %v85 = vadd.f32 %v76, %v83
  %v86 = vadd.f32 %v77, %v83
  %v87 = vadd.f32 %v78, %v83
  %v88 = vpack.c.bf16 %v86, %v85
  %v89 = vpack.c.bf16 %v87, %v87
  %v90 = vld [vmem:[%s3] sm:$0xf]
  %v91 = vld [vmem:[%s3 + $0x4] sm:$0xf]
  %v92 = vld [vmem:[%s3 + $0x8] sm:$0xf]
  %v93 = vld [vmem:[%s3 + $0xc] sm:$0xf]
  %v94 = vld [vmem:[%s4] sm:$0x1]
  %v96 = vlaneseq
  %v97 = vshrl.u32 %v96, 7
  %v98 = vsub.s32 0, %v97
  %v99 = vrot.slane %v94, %v98
  %v105 = vunpack.c.l.b16 %v90
  %v106 = vunpack.c.l.b16 %v91
  %v107 = vunpack.c.l.b16 %v92
  %v108 = vunpack.c.l.b16 %v93
  %v109 = vpack.c.b16 %v106, %v105
  %v110 = vpack.c.b16 %v108, %v107
  %v114 = vsel %vm29, %v88, 0
  %v117 = vsel %vm29, %v89, 0
  %119 = vmatprep.subr.bf16.mxu0 0
  %120 = vmatpush1.bf16.msra.mxu0 0
  %121 = vmatprep.subr.bf16.mxu0 0
  %122 = vmatpush1.bf16.msra.mxu0 0
  %123 = vmatprep.subr.bf16.mxu0 0
  %124 = vmatpush1.bf16.msra.mxu0 0
  %125 = vmatprep.subr.bf16.mxu0 0
  %126 = vmatpush1.bf16.msra.mxu0 0
  %127 = vmatprep.subr.bf16.mxu0 0
  %128 = vmatpush1.bf16.msra.mxu0 0
  %129 = vmatprep.subr.bf16.mxu0 0
  %130 = vmatpush1.bf16.msra.mxu0 0
  %131 = vmatprep.subr.bf16.mxu0 0
  %132 = vmatpush1.bf16.msra.mxu0 %v110
  %133 = vmatprep.subr.bf16.mxu0 0
  %134 = vmatpush1.bf16.msra.mxu0 %v109
  %135 = vmatprep.subr.bf16.mxu0 0
  %136 = vmatpush2.bf16.msra.mxu0 0
  %137 = vmatprep.subr.bf16.mxu0 0
  %138 = vmatpush2.bf16.msra.mxu0 0
  %139 = vmatprep.subr.bf16.mxu0 0
  %140 = vmatpush2.bf16.msra.mxu0 0
  %141 = vmatprep.subr.bf16.mxu0 0
  %142 = vmatpush2.bf16.msra.mxu0 0
  %143 = vmatprep.subr.bf16.mxu0 0
  %144 = vmatpush2.bf16.msra.mxu0 0
  %145 = vmatprep.subr.bf16.mxu0 0
  %146 = vmatpush2.bf16.msra.mxu0 0
  %147 = vmatprep.subr.bf16.mxu0 0
  %148 = vmatpush2.bf16.msra.mxu0 0
  %149 = vmatprep.subr.bf16.mxu0 0
  %150 = vmatpush2.bf16.msra.mxu0 0
  %151 = vmatprep.mubr.bf16.mxu0 0
  %152 = vmatmul.mubr.bf16.gmra.mxu0 %v114
  %v153 = vpop.f32.mrf.mxu0
  %v154 = vadd.f32 %v99, %v153
  %v155 = vpop.f32.mrf.mxu0
  %v156 = vpop.f32.mrf.mxu0
  %v157 = vadd.f32 %v99, %v156
  %v158 = vpop.f32.mrf.mxu0
  %159 = vmatprep.mubr.bf16.mxu0 0
  %160 = vmatmul.mubr.bf16.gmra.mxu0 %v117
  %v161 = vpop.f32.mrf.mxu0
  %v162 = vadd.f32 %v99, %v161
  %v163 = vpop.f32.mrf.mxu0
  %v164 = vpop.f32.mrf.mxu0
  %v165 = vpop.f32.mrf.mxu0
  %166 = vdwg.mxu0
  %v167 = vpack.c.bf16 %v157, %v154
  %v168 = vpack.c.bf16 %v162, %v162
  %v171 = vunpack.c.l.b16 %v167
  %v172 = vunpack.c.h.b16 %v167
  %v173 = vunpack.c.l.b16 %v168
  %v174 = vpack.c.b16 %v171, %v171
  %v175 = vpack.c.b16 %v172, %v172
  %v176 = vpack.c.b16 %v173, %v173
  %vm180 = vcmask 781312
  %181 = vst.msk [vmem:[%s5] sm:$0xf] %vm180, %v174
  %182 = vst.msk [vmem:[%s5 + $0x4] sm:$0xf] %vm180, %v175
  %183 = vst.msk [vmem:[%s5 + $0x8] sm:$0xf] %vm180, %v176
  // Predicated region
  $region22: #{forward.11} parent=0 // pred_check
    _
  $region23: #{forward.11} parent=0 // pred_check_branch
    %185 = sbr.rel (0) target = $region25
  $region24: #{forward.11} parent=0 // pred_region
    _
  $region25: #{forward.11} parent=0 // pred_fallthru
    _
  // Predicated region
  $region26: #{forward.11} parent=0 // pred_check
    _
  $region27: #{forward.11} parent=0 // pred_check_branch
    %187 = sbr.rel (0) target = $region29
  $region28: #{forward.11} parent=0 // pred_region
    _
  $region29: #{forward.11} parent=0 // pred_fallthru
    _

// kernel: forward.12
$region0: #{forward.12}
  #allocation0 [shape = 'u32[]', space=smem, size = 0x4, offset = 0x4, fixed_abs, tag = 'smem constant byte address 0x4 - core index']
  #allocation1 [shape = 'u32[144,128]{1,0:T(1,128)}', space=vmem, size = 0x12000, scoped, tag = 'internal scratch']
  %s0 = inlined_call_operand.vmem [shape: bf16[8,16,8], index: 0, kind: input, shape index: {}]
  %s1 = inlined_call_operand.vmem [shape: bf16[8,9,8], index: 1, kind: input, shape index: {}]
  %s2 = inlined_call_operand.vmem [shape: bf16[8,9,8], index: 2, kind: input, shape index: {}]
  %s3 = inlined_call_operand.vmem [shape: bf16[8,16,8], index: 3, kind: output, shape index: {}]
  %s4 = sld [smem:[#allocation0]]
  $region45: #{forward.12} parent=0
    _
  %s6 = ssub.s32 1, %s4
  %s7 = scalar_select 0, %s6, %s4
  loop: start=0, step=1, limit=10
  $region2: #{forward.12} parent=0 // loop_pre_header
    _
  $region3: #{forward.12} parent=0 // loop_header
    %s9 = sphi 0, %s13
    %p10 = scmp.ge.s32.totalorder %s9, 10
    %s16 = sphi 0, %s28
    %s17 = sphi 0, %s24
    %s18 = sphi 0, %s16
    %s19 = sphi 0, %s17
    %s20 = sphi 0, %s18
    %s21 = sphi 0, %s19
    %s33 = sphi 0, %s35
    %s36 = sphi 0, %s33
    %s37 = sphi 0, %s36
    %s53 = sphi 0, %s37
    %s59 = sphi 0, %s61
    %s62 = sphi 0, %s59
    %s63 = sphi 0, %s62
    %s79 = sphi 0, %s63
    %s85 = sphi 0, %s87
    %s88 = sphi 0, %s85
    %s89 = sphi 0, %s88
    %s105 = sphi 0, %s89
    %s113 = sphi 0, %s115
    %s116 = sphi 0, %s113
    %s117 = sphi 0, %s116
    %s133 = sphi 0, %s117
  $region4: #{forward.12} parent=0 // loop_header_branch
    %12 = sbr.rel (%p10) target = $region8
  $region5: #{forward.12} parent=0 // loop_body
    %s14 = ssub.s32 %s9, 1
    %s15 = ssub.s32 %s9, 2
    %s22 = sadd.s32 1, %s17
    %p23 = scmp.ge.s32.totalorder %s22, 1
    %s24 = scalar_select %p23, 0, %s22
    %s25 = sadd.s32 1, %s16
    %s26 = scalar_select %p23, %s25, %s16
    %p27 = scmp.ge.s32.totalorder %s26, 8
    %s28 = scalar_select %p27, 0, %s26
    %s29 = ssub.s32 %s16, %s28
    %s30 = ssub.s32 %s17, %s24
    %s31 = sor.u32 %s29, %s30
    %p32 = scmp.eq.s32.totalorder %s31, 0
    %s34 = sadd.s32 %s33, 1
    %s35 = scalar_select %p32, %s33, %s34
    %p38 = pneg %p32
    %p39 = scmp.eq.s32.totalorder %s9, 7
    %p40 = por %p38, %p39
    %p41 = scmp.ne.s32.totalorder %s33, %s36
    %p42 = scmp.eq.s32.totalorder %s9, 0
    %p43 = por %p41, %p42
    %p44 = scmp.ne.s32.totalorder %s33, %s36
    %p45 = scmp.eq.s32.totalorder %s14, 7
    %p46 = por %p44, %p45
    %p47 = scmp.ne.s32.totalorder %s36, %s37
    %p48 = scmp.eq.s32.totalorder %s14, 0
    %p49 = por %p47, %p48
    %p50 = scmp.ne.s32.totalorder %s36, %s37
    %p51 = scmp.eq.s32.totalorder %s15, 7
    %p52 = por %p50, %p51
    %p54 = scmp.ne.s32.totalorder %s37, %s53
    %p55 = scmp.eq.s32.totalorder %s15, 0
    %p56 = por %p54, %p55
    %s57 = ssub.s32 %s16, %s28
    %p58 = scmp.eq.s32.totalorder %s57, 0
    %s60 = sadd.s32 %s59, 1
    %s61 = scalar_select %p58, %s59, %s60
    %p64 = pneg %p58
    %p65 = scmp.eq.s32.totalorder %s9, 7
    %p66 = por %p64, %p65
    %p67 = scmp.ne.s32.totalorder %s59, %s62
    %p68 = scmp.eq.s32.totalorder %s9, 0
    %p69 = por %p67, %p68
    %p70 = scmp.ne.s32.totalorder %s59, %s62
    %p71 = scmp.eq.s32.totalorder %s14, 7
    %p72 = por %p70, %p71
    %p73 = scmp.ne.s32.totalorder %s62, %s63
    %p74 = scmp.eq.s32.totalorder %s14, 0
    %p75 = por %p73, %p74
    %p76 = scmp.ne.s32.totalorder %s62, %s63
    %p77 = scmp.eq.s32.totalorder %s15, 7
    %p78 = por %p76, %p77
    %p80 = scmp.ne.s32.totalorder %s63, %s79
    %p81 = scmp.eq.s32.totalorder %s15, 0
    %p82 = por %p80, %p81
    %s83 = ssub.s32 %s16, %s28
    %p84 = scmp.eq.s32.totalorder %s83, 0
    %s86 = sadd.s32 %s85, 1
    %s87 = scalar_select %p84, %s85, %s86
    %p90 = pneg %p84
    %p91 = scmp.eq.s32.totalorder %s9, 7
    %p92 = por %p90, %p91
    %p93 = scmp.ne.s32.totalorder %s85, %s88
    %p94 = scmp.eq.s32.totalorder %s9, 0
    %p95 = por %p93, %p94
    %p96 = scmp.ne.s32.totalorder %s85, %s88
    %p97 = scmp.eq.s32.totalorder %s14, 7
    %p98 = por %p96, %p97
    %p99 = scmp.ne.s32.totalorder %s88, %s89
    %p100 = scmp.eq.s32.totalorder %s14, 0
    %p101 = por %p99, %p100
    %p102 = scmp.ne.s32.totalorder %s88, %s89
    %p103 = scmp.eq.s32.totalorder %s15, 7
    %p104 = por %p102, %p103
    %p106 = scmp.ne.s32.totalorder %s89, %s105
    %p107 = scmp.eq.s32.totalorder %s15, 0
    %p108 = por %p106, %p107
    %s109 = ssub.s32 %s16, %s28
    %s110 = ssub.s32 %s17, %s24
    %s111 = sor.u32 %s109, %s110
    %p112 = scmp.eq.s32.totalorder %s111, 0
    %s114 = sadd.s32 %s113, 1
    %s115 = scalar_select %p112, %s113, %s114
    %p118 = pneg %p112
    %p119 = scmp.eq.s32.totalorder %s9, 7
    %p120 = por %p118, %p119
    %p121 = scmp.ne.s32.totalorder %s113, %s116
    %p122 = scmp.eq.s32.totalorder %s9, 0
    %p123 = por %p121, %p122
    %p124 = scmp.ne.s32.totalorder %s113, %s116
    %p125 = scmp.eq.s32.totalorder %s14, 7
    %p126 = por %p124, %p125
    %p127 = scmp.ne.s32.totalorder %s116, %s117
    %p128 = scmp.eq.s32.totalorder %s14, 0
    %p129 = por %p127, %p128
    %p130 = scmp.ne.s32.totalorder %s116, %s117
    %p131 = scmp.eq.s32.totalorder %s15, 7
    %p132 = por %p130, %p131
    %p134 = scmp.ne.s32.totalorder %s117, %s133
    %p135 = scmp.eq.s32.totalorder %s15, 0
    %p136 = por %p134, %p135
    %p137 = scmp.le.s32.totalorder 1, %s9
    %p138 = scmp.lt.s32.totalorder %s9, 9
    %p139 = pnand %p137, %p138
    %p140 = pneg %p139
    // Predicated region
    $region9: #{forward.12} parent=5 // pred_check
      _
    $region10: #{forward.12} parent=5 // pred_check_branch
      %142 = sbr.rel (%p139) target = $region12
    $region11: #{forward.12} parent=5 // pred_region
      %s143 = ssub.s32 %s9, 1
    $region12: #{forward.12} parent=5 // pred_fallthru
      _
    %p144 = scmp.lt.s32.totalorder %s9, 8
    // Predicated region
    $region13: #{forward.12} parent=5 // pred_check
      %p145 = pneg %p144
    $region14: #{forward.12} parent=5 // pred_check_branch
      %147 = sbr.rel (%p145) target = $region16
    $region15: #{forward.12} parent=5 // pred_region
      // Predicated region
      $region17: #{forward.12} parent=15 // pred_check
        %p148 = pneg %p43
      $region18: #{forward.12} parent=15 // pred_check_branch
        %150 = sbr.rel (%p148) target = $region20
      $region19: #{forward.12} parent=15 // pred_region
        %s151 = smul.u32 2, %s17
        %p152 = scmp.lt.s32.totalorder %s16, 7
        %s153 = scalar_select %p152, %s16, 7
        %p154 = scmp.lt.s32.totalorder %s151, 1
        %s155 = scalar_select %p154, %s151, 1
        %s156 = smul.addr %s153, 2
        %s157 = sadd.s32 %s155, %s156
        %s158 = smul.addr %s157, 4
        %s159 = scalar_lea.vmem %s0, %s158
        %s160 = smul.u32 2, %s17
      $region20: #{forward.12} parent=15 // pred_fallthru
        _
      // Predicated region
      $region21: #{forward.12} parent=15 // pred_check
        %p161 = pneg %p69
      $region22: #{forward.12} parent=15 // pred_check_branch
        %163 = sbr.rel (%p161) target = $region24
      $region23: #{forward.12} parent=15 // pred_region
        %p164 = scmp.lt.s32.totalorder %s16, 7
        %s165 = scalar_select %p164, %s16, 7
        %s166 = smul.addr %s165, 2
        %s167 = smul.addr %s166, 4
        %s168 = scalar_lea.vmem %s1, %s167
      $region24: #{forward.12} parent=15 // pred_fallthru
        _
      // Predicated region
      $region25: #{forward.12} parent=15 // pred_check
        %p169 = pneg %p95
      $region26: #{forward.12} parent=15 // pred_check_branch
        %171 = sbr.rel (%p169) target = $region28
      $region27: #{forward.12} parent=15 // pred_region
        %p172 = scmp.lt.s32.totalorder %s16, 7
        %s173 = scalar_select %p172, %s16, 7
        %s174 = smul.addr %s173, 2
        %s175 = smul.addr %s174, 4
        %s176 = scalar_lea.vmem %s2, %s175
      $region28: #{forward.12} parent=15 // pred_fallthru
        _
    $region16: #{forward.12} parent=5 // pred_fallthru
      _
    %p177 = scmp.le.s32.totalorder 1, %s9
    %p178 = scmp.lt.s32.totalorder %s9, 9
    %p179 = pnand %p177, %p178
    %p180 = pneg %p179
    // Predicated region
    $region29: #{forward.12} parent=5 // pred_check
      _
    $region30: #{forward.12} parent=5 // pred_check_branch
      %182 = sbr.rel (%p179) target = $region32
    $region31: #{forward.12} parent=5 // pred_region
      %s183 = ssub.s32 %s9, 1
      %s184 = smul.u32 2, %s19
      %p185 = scmp.lt.s32.totalorder %s18, 7
      %s186 = scalar_select %p185, %s18, 7
      %p187 = scmp.lt.s32.totalorder %s184, 1
      %s188 = scalar_select %p187, %s184, 1
      %s189 = smul.addr %s186, 2
      %s190 = sadd.s32 %s188, %s189
      %s191 = smul.addr %s190, 4
      %s192 = scalar_lea.vmem %s0, %s191
      %p193 = pneg %p49
      %p194 = pneg %p46
      %p195 = scmp.lt.s32.totalorder %s18, 7
      %s196 = scalar_select %p195, %s18, 7
      %s197 = smul.addr %s196, 2
      %s198 = smul.addr %s197, 4
      %s199 = scalar_lea.vmem %s1, %s198
      %p200 = pneg %p75
      %p201 = pneg %p72
      %p202 = scmp.lt.s32.totalorder %s18, 7
      %s203 = scalar_select %p202, %s18, 7
      %s204 = smul.addr %s203, 2
      %s205 = smul.addr %s204, 4
      %s206 = scalar_lea.vmem %s2, %s205
      %p207 = pneg %p101
      %p208 = pneg %p98
      %p209 = pneg %p129
      %p210 = pneg %p126
      %s211 = smul.u32 2, %s19
      %p212 = scmp.lt.s32.totalorder %s18, 7
      %s213 = scalar_select %p212, %s18, 7
      %p214 = scmp.lt.s32.totalorder %s211, 1
      %s215 = scalar_select %p214, %s211, 1
      %s216 = smul.addr %s213, 2
      %s217 = sadd.s32 %s215, %s216
      %s218 = smul.addr %s217, 4
      %s219 = scalar_lea.vmem %s3, %s218
      %s220 = smul.u32 2, %s19
      %p221 = scmp.lt.s32.totalorder %s18, 7
      %s222 = scalar_select %p221, %s18, 7
      %p223 = scmp.lt.s32.totalorder %s220, 1
      %s224 = scalar_select %p223, %s220, 1
      %s225 = smul.addr %s222, 2
      %s226 = sadd.s32 %s224, %s225
      %s227 = smul.addr %s226, 4
      %s228 = scalar_lea.vmem %s0, %s227
      %s229 = smul.u32 2, %s19
      %p230 = scmp.lt.s32.totalorder %s18, 7
      %s231 = scalar_select %p230, %s18, 7
      %s232 = smul.addr %s231, 2
      %s233 = smul.addr %s232, 4
      %s234 = scalar_lea.vmem %s1, %s233
      %p235 = scmp.lt.s32.totalorder %s18, 7
      %s236 = scalar_select %p235, %s18, 7
      %s237 = smul.addr %s236, 2
      %s238 = smul.addr %s237, 4
      %s239 = scalar_lea.vmem %s2, %s238
      %s240 = smul.u32 2, %s19
      %p241 = scmp.lt.s32.totalorder %s18, 7
      %s242 = scalar_select %p241, %s18, 7
      %p243 = scmp.lt.s32.totalorder %s240, 1
      %s244 = scalar_select %p243, %s240, 1
      %s245 = smul.addr %s242, 2
      %s246 = sadd.s32 %s244, %s245
      %s247 = smul.addr %s246, 4
      %s248 = scalar_lea.vmem %s3, %s247
      %s249 = smul.u32 2, %s19
      %v251 = vld [vmem:[%s228] sm:$0xf]
      %v252 = vld [vmem:[%s228 + $0x4] sm:$0xf]
      %v253 = vld [vmem:[%s234] sm:$0xf]
      %v254 = vld [vmem:[%s234 + $0x4] sm:$0x1]
      %v257 = vunpack.c.l.b16 %v251
      %v258 = vunpack.c.l.b16 %v252
      %v259 = vpack.c.b16 %v258, %v257
      %v262 = vunpack.c.l.b16 %v253
      %v263 = vunpack.c.l.b16 %v254
      %v264 = vpack.c.b16 %v263, %v262
      %vm265 = vcmask 64512
      %v267 = vsel %vm265, %v259, 0
      %v270 = vsel %vm265, %v264, 0
      %272 = vmatprep.subr.bf16.mxu0 0
      %273 = vmatpush1.bf16.xpose.msra.mxu0 0
      %274 = vmatprep.subr.bf16.mxu0 0
      %275 = vmatpush1.bf16.xpose.msra.mxu0 0
      %276 = vmatprep.subr.bf16.mxu0 0
      %277 = vmatpush1.bf16.xpose.msra.mxu0 0
      %278 = vmatprep.subr.bf16.mxu0 0
      %279 = vmatpush1.bf16.xpose.msra.mxu0 0
      %280 = vmatprep.subr.bf16.mxu0 0
      %281 = vmatpush1.bf16.xpose.msra.mxu0 0
      %282 = vmatprep.subr.bf16.mxu0 0
      %283 = vmatpush1.bf16.xpose.msra.mxu0 0
      %284 = vmatprep.subr.bf16.mxu0 0
      %285 = vmatpush1.bf16.xpose.msra.mxu0 0
      %286 = vmatprep.subr.bf16.mxu0 0
      %287 = vmatpush1.bf16.xpose.msra.mxu0 %v270
      %288 = vmatprep.subr.bf16.mxu0 0
      %289 = vmatpush2.bf16.xpose.msra.mxu0 0
      %290 = vmatprep.subr.bf16.mxu0 0
      %291 = vmatpush2.bf16.xpose.msra.mxu0 0
      %292 = vmatprep.subr.bf16.mxu0 0
      %293 = vmatpush2.bf16.xpose.msra.mxu0 0
      %294 = vmatprep.subr.bf16.mxu0 0
      %295 = vmatpush2.bf16.xpose.msra.mxu0 0
      %296 = vmatprep.subr.bf16.mxu0 0
      %297 = vmatpush2.bf16.xpose.msra.mxu0 0
      %298 = vmatprep.subr.bf16.mxu0 0
      %299 = vmatpush2.bf16.xpose.msra.mxu0 0
      %300 = vmatprep.subr.bf16.mxu0 0
      %301 = vmatpush2.bf16.xpose.msra.mxu0 0
      %302 = vmatprep.subr.bf16.mxu0 0
      %303 = vmatpush2.bf16.xpose.msra.mxu0 0
      %304 = vmatprep.mubr.bf16.mxu0 0
      %305 = vmatmul.mubr.bf16.gmra.mxu0 %v267
      %v306 = vpop.f32.mrf.mxu0
      %v307 = vadd.f32 0.0, %v306
      %v308 = vpop.f32.mrf.mxu0
      %v309 = vpop.f32.mrf.mxu0
      %v310 = vadd.f32 0.0, %v309
      %v311 = vpop.f32.mrf.mxu0
      %312 = vdwg.mxu0
      %v313 = vmul.f32 %v307, 0.35355338
      %v314 = vmul.f32 %v310, 0.35355338
      %vm315 = vcmask 72704
      %v316 = vsel %vm315, %v313, -inf
      %317 = vmax.xlane.f32.xlu0 %v316
      %v318 = vpop.xlane.xlu0 %317
      %v319 = vsel %vm315, %v314, -inf
      %320 = vmax.xlane.f32.xlu0 %v319
      %v321 = vpop.xlane.xlu0 %320
      %v322 = vsub.f32 %v313, %v318
      %v323 = vsub.f32 %v314, %v321
      %v324 = vmul.f32 %v322, 1.442695
      %v325 = vpow.pop %v324
      %v326 = vmul.f32 %v323, 1.442695
      %v327 = vpow.pop %v326
      %v328 = vsel %vm315, %v325, 0.0
      %329 = vadd.xlane.f32.xlu0 %v328
      %v330 = vpop.xlane.xlu0 %329
      %v331 = vsel %vm315, %v327, 0.0
      %332 = vadd.xlane.f32.xlu0 %v331
      %v333 = vpop.xlane.xlu0 %332
      %v334 = vrcp.pop %v330
      %v335 = vrcp.pop %v333
      %v336 = vmul.f32 %v325, %v334
      %v337 = vmul.f32 %v327, %v335
      %v338 = vpack.c.bf16 %v337, %v336
      %v339 = vld [vmem:[%s239] sm:$0xf]
      %v340 = vld [vmem:[%s239 + $0x4] sm:$0x1]
      %v343 = vunpack.c.l.b16 %v339
      %v344 = vunpack.c.l.b16 %v340
      %v345 = vpack.c.b16 %v344, %v343
      %v347 = vsel %vm315, %v338, 0
      %vm349 = vcmask 1043456
      %vm350 = vcmask 1044480
      %v351 = vsel %vm349, 4294967295, 65535
      %v352 = vsel %vm350, %v351, 0
      %v354 = vand.u32 %v345, %v352
      %356 = vmatprep.subr.bf16.mxu0 0
      %357 = vmatpush1.bf16.msra.mxu0 0
      %358 = vmatprep.subr.bf16.mxu0 0
      %359 = vmatpush1.bf16.msra.mxu0 0
      %360 = vmatprep.subr.bf16.mxu0 0
      %361 = vmatpush1.bf16.msra.mxu0 0
      %362 = vmatprep.subr.bf16.mxu0 0
      %363 = vmatpush1.bf16.msra.mxu0 0
      %364 = vmatprep.subr.bf16.mxu0 0
      %365 = vmatpush1.bf16.msra.mxu0 0
      %366 = vmatprep.subr.bf16.mxu0 0
      %367 = vmatpush1.bf16.msra.mxu0 0
      %368 = vmatprep.subr.bf16.mxu0 0
      %369 = vmatpush1.bf16.msra.mxu0 0
      %370 = vmatprep.subr.bf16.mxu0 0
      %371 = vmatpush1.bf16.msra.mxu0 %v354
      %372 = vmatprep.subr.bf16.mxu0 0
      %373 = vmatpush2.bf16.msra.mxu0 0
      %374 = vmatprep.subr.bf16.mxu0 0
      %375 = vmatpush2.bf16.msra.mxu0 0
      %376 = vmatprep.subr.bf16.mxu0 0
      %377 = vmatpush2.bf16.msra.mxu0 0
      %378 = vmatprep.subr.bf16.mxu0 0
      %379 = vmatpush2.bf16.msra.mxu0 0
      %380 = vmatprep.subr.bf16.mxu0 0
      %381 = vmatpush2.bf16.msra.mxu0 0
      %382 = vmatprep.subr.bf16.mxu0 0
      %383 = vmatpush2.bf16.msra.mxu0 0
      %384 = vmatprep.subr.bf16.mxu0 0
      %385 = vmatpush2.bf16.msra.mxu0 0
      %386 = vmatprep.subr.bf16.mxu0 0
      %387 = vmatpush2.bf16.msra.mxu0 0
      %388 = vmatprep.mubr.bf16.mxu0 0
      %389 = vmatmul.mubr.bf16.gmra.mxu0 %v347
      %v390 = vpop.f32.mrf.mxu0
      %v391 = vadd.f32 0.0, %v390
      %v392 = vpop.f32.mrf.mxu0
      %v393 = vpop.f32.mrf.mxu0
      %v394 = vadd.f32 0.0, %v393
      %v395 = vpop.f32.mrf.mxu0
      %396 = vdwg.mxu0
      %v397 = vpack.c.bf16 %v394, %v391
      %v399 = vunpack.c.l.b16 %v397
      %v400 = vunpack.c.h.b16 %v397
      %v401 = vpack.c.b16 %v399, %v399
      %v402 = vpack.c.b16 %v400, %v400
      %vm405 = vcmask 60416
      %406 = vst.msk [vmem:[%s248] sm:$0xf] %vm405, %v401
      %407 = vst.msk [vmem:[%s248 + $0x4] sm:$0xf] %vm405, %v402
      %s408 = smul.u32 2, %s19
      %p409 = scmp.lt.s32.totalorder %s18, 7
      %s410 = scalar_select %p409, %s18, 7
      %p411 = scmp.lt.s32.totalorder %s408, 1
      %s412 = scalar_select %p411, %s408, 1
      %s413 = smul.addr %s410, 2
      %s414 = sadd.s32 %s412, %s413
      %s415 = smul.addr %s414, 4
      %s416 = scalar_lea.vmem %s3, %s415
      // Predicated region
      $region33: #{forward.12} parent=31 // pred_check
        %p417 = pneg %p126
      $region34: #{forward.12} parent=31 // pred_check_branch
        %419 = sbr.rel (%p417) target = $region36
      $region35: #{forward.12} parent=31 // pred_region
        %s420 = smul.u32 2, %s19
      $region36: #{forward.12} parent=31 // pred_fallthru
        _
    $region32: #{forward.12} parent=5 // pred_fallthru
      _
    %p421 = scmp.le.s32.totalorder 2, %s9
    // Predicated region
    $region37: #{forward.12} parent=5 // pred_check
      %p422 = pneg %p421
    $region38: #{forward.12} parent=5 // pred_check_branch
      %424 = sbr.rel (%p422) target = $region40
    $region39: #{forward.12} parent=5 // pred_region
      %s425 = ssub.s32 %s9, 2
      // Predicated region
      $region41: #{forward.12} parent=39 // pred_check
        %p426 = pneg %p132
      $region42: #{forward.12} parent=39 // pred_check_branch
        %428 = sbr.rel (%p426) target = $region44
      $region43: #{forward.12} parent=39 // pred_region
        %s429 = smul.u32 2, %s21
        %p430 = scmp.lt.s32.totalorder %s20, 7
        %s431 = scalar_select %p430, %s20, 7
        %p432 = scmp.lt.s32.totalorder %s429, 1
        %s433 = scalar_select %p432, %s429, 1
        %s434 = smul.addr %s431, 2
        %s435 = sadd.s32 %s433, %s434
        %s436 = smul.addr %s435, 4
        %s437 = scalar_lea.vmem %s3, %s436
      $region44: #{forward.12} parent=39 // pred_fallthru
        _
    $region40: #{forward.12} parent=5 // pred_fallthru
      _
  $region6: #{forward.12} parent=0 // loop_footer
    %s13 = sadd.s32 1, %s9
  $region7: #{forward.12} parent=0 // loop_footer_branch
    %8 = sbr.rel target = $region3
  $region8: #{forward.12} parent=0 // loop_exit
    _

// kernel: forward.17
$region0: #{forward.17}
  #allocation0 [shape = 'u32[]', space=smem, size = 0x4, offset = 0x4, fixed_abs, tag = 'smem constant byte address 0x4 - core index']
  #allocation1 [shape = 'u32[144,128]{1,0:T(1,128)}', space=vmem, size = 0x12000, scoped, tag = 'internal scratch']
  #allocation2 [shape = 'f32[1,1]{1,0:T(1,128)S(1)}', space=vmem, size = 0x200, scoped, tag = 'scoped memory for forward.17']
  %s0 = inlined_call_operand.vmem [shape: bf16[8,32], index: 0, kind: input, shape index: {}]
  %s1 = inlined_call_operand.vmem [shape: f32[8,32], index: 1, kind: input, shape index: {}]
  %s2 = inlined_call_operand.vmem [shape: f32[1,32], index: 2, kind: input, shape index: {}]
  %s3 = inlined_call_operand.vmem [shape: f32[1,32], index: 3, kind: input, shape index: {}]
  %s4 = inlined_call_operand.<no memory space> [shape: f32[1,1], index: 4, kind: input, shape index: {}]
  %s5 = inlined_call_operand.vmem [shape: bf16[32,10], index: 5, kind: input, shape index: {}]
  %s6 = inlined_call_operand.vmem [shape: f32[1,10], index: 6, kind: input, shape index: {}]
  %s7 = inlined_call_operand.vmem [shape: f32[8,10], index: 7, kind: output, shape index: {}]
  %s8 = sld [smem:[#allocation0]]
  $region38: #{forward.17} parent=0
    _
  %s10 = ssub.s32 1, %s8
  %s11 = scalar_select 0, %s10, %s8
  %v12 = vstv %s4
  %13 = vst [vmem:[#allocation2] sm:$0x1] %v12
  // Predicated region
  $region2: #{forward.17} parent=0 // pred_check
    _
  $region3: #{forward.17} parent=0 // pred_check_branch
    %15 = sbr.rel (0) target = $region5
  $region4: #{forward.17} parent=0 // pred_region
    _
  $region5: #{forward.17} parent=0 // pred_fallthru
    _
  // Predicated region
  $region6: #{forward.17} parent=0 // pred_check
    _
  $region7: #{forward.17} parent=0 // pred_check_branch
    %17 = sbr.rel (0) target = $region9
  $region8: #{forward.17} parent=0 // pred_region
    _
  $region9: #{forward.17} parent=0 // pred_fallthru
    _
  // Predicated region
  $region10: #{forward.17} parent=0 // pred_check
    _
  $region11: #{forward.17} parent=0 // pred_check_branch
    %19 = sbr.rel (0) target = $region13
  $region12: #{forward.17} parent=0 // pred_region
    _
  $region13: #{forward.17} parent=0 // pred_fallthru
    _
  // Predicated region
  $region14: #{forward.17} parent=0 // pred_check
    _
  $region15: #{forward.17} parent=0 // pred_check_branch
    %21 = sbr.rel (0) target = $region17
  $region16: #{forward.17} parent=0 // pred_region
    _
  $region17: #{forward.17} parent=0 // pred_fallthru
    _
  // Predicated region
  $region18: #{forward.17} parent=0 // pred_check
    _
  $region19: #{forward.17} parent=0 // pred_check_branch
    %23 = sbr.rel (0) target = $region21
  $region20: #{forward.17} parent=0 // pred_region
    _
  $region21: #{forward.17} parent=0 // pred_fallthru
    _
  // Predicated region
  $region22: #{forward.17} parent=0 // pred_check
    _
  $region23: #{forward.17} parent=0 // pred_check_branch
    %25 = sbr.rel (0) target = $region25
  $region24: #{forward.17} parent=0 // pred_region
    _
  $region25: #{forward.17} parent=0 // pred_fallthru
    _
  // Predicated region
  $region26: #{forward.17} parent=0 // pred_check
    _
  $region27: #{forward.17} parent=0 // pred_check_branch
    %27 = sbr.rel (0) target = $region29
  $region28: #{forward.17} parent=0 // pred_region
    _
  $region29: #{forward.17} parent=0 // pred_fallthru
    _
  %v29 = vld [vmem:[%s0] sm:$0xf]
  %v30 = vunpack.c.l.bf16 %v29
  %v31 = vld [vmem:[%s2] sm:$0x1]
  %v32 = vld [vmem:[%s3] sm:$0x1]
  %vm33 = vcmask 261120
  %v34 = vsel %vm33, %v30, 0.0
  %35 = vadd.xlane.f32.xlu0 %v34
  %v36 = vpop.xlane.xlu0 %35
  %v37 = vrcp.pop 32.0
  %v38 = vmul.f32 %v36, %v37
  %v39 = vsub.f32 %v30, %v38
  %v40 = vmul.f32 %v39, %v39
  %v41 = vsel %vm33, %v40, 0.0
  %42 = vadd.xlane.f32.xlu0 %v41
  %v43 = vpop.xlane.xlu0 %42
  %v44 = vmul.f32 %v43, %v37
  %v45 = vadd.f32 %v44, 1e-06
  %v46 = vrsqrt.pop %v45
  %v47 = vmul.f32 %v39, %v46
  %v49 = vlaneseq
  %v50 = vshrl.u32 %v49, 7
  %v51 = vsub.s32 0, %v50
  %v52 = vrot.slane %v31, %v51
  %v54 = vmul.f32 %v47, %v52
  %v56 = vlaneseq
  %v57 = vshrl.u32 %v56, 7
  %v58 = vsub.s32 0, %v57
  %v59 = vrot.slane %v32, %v58
  %v61 = vadd.f32 %v54, %v59
  %v62 = vld [vmem:[#allocation2] sm:$0x1]
  %v63 = vxor.u32 %v62, 2147483648
  %v64 = vmul.f32 %v63, 1.442695
  %v65 = vpow.pop %v64
  %v66 = vadd.f32 %v65, 1.0
  %v67 = vrcp.pop %v66
  %v68 = vmul.f32 1.0, %v67
  %v70 = vlaneseq
  %v71 = vshrl.u32 %v70, 7
  %v72 = vsub.s32 0, %v71
  %v73 = vrot.slane %v68, %v72
  %74 = vset.pattern.permute.xlu0 0
  %75 = vperm.xlu0 %74, %v73
  %v76 = vpop.permute.xlu0 %75
  %v78 = vmul.f32 %v76, %v61
  %v79 = vsub.f32 1.0, %v68
  %v80 = vld [vmem:[%s1] sm:$0xff]
  %v82 = vlaneseq
  %v83 = vshrl.u32 %v82, 7
  %v84 = vsub.s32 0, %v83
  %v85 = vrot.slane %v79, %v84
  %86 = vset.pattern.permute.xlu0 0
  %87 = vperm.xlu0 %86, %v85
  %v88 = vpop.permute.xlu0 %87
  %v90 = vmul.f32 %v88, %v80
  %v91 = vadd.f32 %v78, %v90
  %v92 = vpack.c.bf16 %v91, %v91
  %v93 = vld [vmem:[%s5] sm:$0xf]
  %v94 = vld [vmem:[%s5 + $0x4] sm:$0xf]
  %v95 = vld [vmem:[%s5 + $0x8] sm:$0xf]
  %v96 = vld [vmem:[%s5 + $0xc] sm:$0xf]
  %v97 = vld [vmem:[%s6] sm:$0x1]
  %v99 = vlaneseq
  %v100 = vshrl.u32 %v99, 7
  %v101 = vsub.s32 0, %v100
  %v102 = vrot.slane %v97, %v101
  %v108 = vunpack.c.l.b16 %v93
  %v109 = vunpack.c.l.b16 %v94
  %v110 = vunpack.c.l.b16 %v95
  %v111 = vunpack.c.l.b16 %v96
  %v112 = vpack.c.b16 %v109, %v108
  %v113 = vpack.c.b16 %v111, %v110
  %v117 = vsel %vm33, %v92, 0
  %119 = vmatprep.subr.bf16.mxu0 0
  %120 = vmatpush1.bf16.msra.mxu0 0
  %121 = vmatprep.subr.bf16.mxu0 0
  %122 = vmatpush1.bf16.msra.mxu0 0
  %123 = vmatprep.subr.bf16.mxu0 0
  %124 = vmatpush1.bf16.msra.mxu0 0
  %125 = vmatprep.subr.bf16.mxu0 0
  %126 = vmatpush1.bf16.msra.mxu0 0
  %127 = vmatprep.subr.bf16.mxu0 0
  %128 = vmatpush1.bf16.msra.mxu0 0
  %129 = vmatprep.subr.bf16.mxu0 0
  %130 = vmatpush1.bf16.msra.mxu0 0
  %131 = vmatprep.subr.bf16.mxu0 0
  %132 = vmatpush1.bf16.msra.mxu0 %v113
  %133 = vmatprep.subr.bf16.mxu0 0
  %134 = vmatpush1.bf16.msra.mxu0 %v112
  %135 = vmatprep.subr.bf16.mxu0 0
  %136 = vmatpush2.bf16.msra.mxu0 0
  %137 = vmatprep.subr.bf16.mxu0 0
  %138 = vmatpush2.bf16.msra.mxu0 0
  %139 = vmatprep.subr.bf16.mxu0 0
  %140 = vmatpush2.bf16.msra.mxu0 0
  %141 = vmatprep.subr.bf16.mxu0 0
  %142 = vmatpush2.bf16.msra.mxu0 0
  %143 = vmatprep.subr.bf16.mxu0 0
  %144 = vmatpush2.bf16.msra.mxu0 0
  %145 = vmatprep.subr.bf16.mxu0 0
  %146 = vmatpush2.bf16.msra.mxu0 0
  %147 = vmatprep.subr.bf16.mxu0 0
  %148 = vmatpush2.bf16.msra.mxu0 0
  %149 = vmatprep.subr.bf16.mxu0 0
  %150 = vmatpush2.bf16.msra.mxu0 0
  %151 = vmatprep.mubr.bf16.mxu0 0
  %152 = vmatmul.mubr.bf16.gmra.mxu0 %v117
  %v153 = vpop.f32.mrf.mxu0
  %v154 = vadd.f32 %v102, %v153
  %v155 = vpop.f32.mrf.mxu0
  %v156 = vpop.f32.mrf.mxu0
  %v157 = vpop.f32.mrf.mxu0
  %158 = vdwg.mxu0
  %vm159 = vcmask 80896
  %160 = vst.msk [vmem:[%s7] sm:$0xff] %vm159, %v154
  // Predicated region
  $region30: #{forward.17} parent=0 // pred_check
    _
  $region31: #{forward.17} parent=0 // pred_check_branch
    %162 = sbr.rel (0) target = $region33
  $region32: #{forward.17} parent=0 // pred_region
    _
  $region33: #{forward.17} parent=0 // pred_fallthru
    _
  // Predicated region
  $region34: #{forward.17} parent=0 // pred_check
    _
  $region35: #{forward.17} parent=0 // pred_check_branch
    %164 = sbr.rel (0) target = $region37
  $region36: #{forward.17} parent=0 // pred_region
    _
  $region37: #{forward.17} parent=0 // pred_fallthru
    _

// kernel: forward.9
$region0: #{forward.9}
  #allocation0 [shape = 'u32[]', space=smem, size = 0x4, offset = 0x4, fixed_abs, tag = 'smem constant byte address 0x4 - core index']
  #allocation1 [shape = 'u32[144,128]{1,0:T(1,128)}', space=vmem, size = 0x12000, scoped, tag = 'internal scratch']
  %s0 = inlined_call_operand.vmem [shape: f32[8,3], index: 0, kind: input, shape index: {}]
  %s1 = inlined_call_operand.vmem [shape: bf16[3,32], index: 1, kind: input, shape index: {}]
  %s2 = inlined_call_operand.vmem [shape: f32[8,32], index: 2, kind: output, shape index: {}]
  %s3 = sld [smem:[#allocation0]]
  $region18: #{forward.9} parent=0
    _
  %s5 = ssub.s32 1, %s3
  %s6 = scalar_select 0, %s5, %s3
  // Predicated region
  $region2: #{forward.9} parent=0 // pred_check
    _
  $region3: #{forward.9} parent=0 // pred_check_branch
    %8 = sbr.rel (0) target = $region5
  $region4: #{forward.9} parent=0 // pred_region
    _
  $region5: #{forward.9} parent=0 // pred_fallthru
    _
  // Predicated region
  $region6: #{forward.9} parent=0 // pred_check
    _
  $region7: #{forward.9} parent=0 // pred_check_branch
    %10 = sbr.rel (0) target = $region9
  $region8: #{forward.9} parent=0 // pred_region
    _
  $region9: #{forward.9} parent=0 // pred_fallthru
    _
  %v12 = vld [vmem:[%s0] sm:$0xff]
  %v13 = vpack.c.bf16 %v12, %v12
  %v14 = vld [vmem:[%s1] sm:$0x3]
  %vm15 = vcmask 23552
  %v17 = vsel %vm15, %v13, 0
  %vm19 = vcmask 1040384
  %vm20 = vcmask 1041408
  %v21 = vsel %vm19, 4294967295, 65535
  %v22 = vsel %vm20, %v21, 0
  %v24 = vand.u32 %v14, %v22
  %26 = vmatprep.subr.bf16.mxu0 0
  %27 = vmatpush1.bf16.msra.mxu0 0
  %28 = vmatprep.subr.bf16.mxu0 0
  %29 = vmatpush1.bf16.msra.mxu0 0
  %30 = vmatprep.subr.bf16.mxu0 0
  %31 = vmatpush1.bf16.msra.mxu0 0
  %32 = vmatprep.subr.bf16.mxu0 0
  %33 = vmatpush1.bf16.msra.mxu0 0
  %34 = vmatprep.subr.bf16.mxu0 0
  %35 = vmatpush1.bf16.msra.mxu0 0
  %36 = vmatprep.subr.bf16.mxu0 0
  %37 = vmatpush1.bf16.msra.mxu0 0
  %38 = vmatprep.subr.bf16.mxu0 0
  %39 = vmatpush1.bf16.msra.mxu0 0
  %40 = vmatprep.subr.bf16.mxu0 0
  %41 = vmatpush1.bf16.msra.mxu0 %v24
  %42 = vmatprep.subr.bf16.mxu0 0
  %43 = vmatpush2.bf16.msra.mxu0 0
  %44 = vmatprep.subr.bf16.mxu0 0
  %45 = vmatpush2.bf16.msra.mxu0 0
  %46 = vmatprep.subr.bf16.mxu0 0
  %47 = vmatpush2.bf16.msra.mxu0 0
  %48 = vmatprep.subr.bf16.mxu0 0
  %49 = vmatpush2.bf16.msra.mxu0 0
  %50 = vmatprep.subr.bf16.mxu0 0
  %51 = vmatpush2.bf16.msra.mxu0 0
  %52 = vmatprep.subr.bf16.mxu0 0
  %53 = vmatpush2.bf16.msra.mxu0 0
  %54 = vmatprep.subr.bf16.mxu0 0
  %55 = vmatpush2.bf16.msra.mxu0 0
  %56 = vmatprep.subr.bf16.mxu0 0
  %57 = vmatpush2.bf16.msra.mxu0 0
  %58 = vmatprep.mubr.bf16.mxu0 0
  %59 = vmatmul.mubr.bf16.gmra.mxu0 %v17
  %v60 = vpop.f32.mrf.mxu0
  %v61 = vadd.f32 0.0, %v60
  %v62 = vpop.f32.mrf.mxu0
  %v63 = vpop.f32.mrf.mxu0
  %v64 = vpop.f32.mrf.mxu0
  %65 = vdwg.mxu0
  %vm66 = vcmask 261120
  %67 = vst.msk [vmem:[%s2] sm:$0xff] %vm66, %v61
  // Predicated region
  $region10: #{forward.9} parent=0 // pred_check
    _
  $region11: #{forward.9} parent=0 // pred_check_branch
    %69 = sbr.rel (0) target = $region13
  $region12: #{forward.9} parent=0 // pred_region
    _
  $region13: #{forward.9} parent=0 // pred_fallthru
    _
  // Predicated region
  $region14: #{forward.9} parent=0 // pred_check
    _
  $region15: #{forward.9} parent=0 // pred_check_branch
    %71 = sbr.rel (0) target = $region17
  $region16: #{forward.9} parent=0 // pred_region
    _
  $region17: #{forward.9} parent=0 // pred_fallthru
    _

// kernel: forward.13
$region0: #{forward.13}
  #allocation0 [shape = 'u32[]', space=smem, size = 0x4, offset = 0x4, fixed_abs, tag = 'smem constant byte address 0x4 - core index']
  #allocation1 [shape = 'u32[144,128]{1,0:T(1,128)}', space=vmem, size = 0x12000, scoped, tag = 'internal scratch']
  %s0 = inlined_call_operand.vmem [shape: bf16[24,32], index: 0, kind: input, shape index: {}]
  %s1 = inlined_call_operand.vmem [shape: bf16[24,32], index: 1, kind: input, shape index: {}]
  %s2 = inlined_call_operand.vmem [shape: bf16[32,32], index: 2, kind: input, shape index: {}]
  %s3 = inlined_call_operand.vmem [shape: f32[1,32], index: 3, kind: input, shape index: {}]
  %s4 = inlined_call_operand.vmem [shape: f32[1,32], index: 4, kind: input, shape index: {}]
  %s5 = inlined_call_operand.vmem [shape: f32[1,32], index: 5, kind: input, shape index: {}]
  %s6 = inlined_call_operand.vmem [shape: bf16[32,128], index: 6, kind: input, shape index: {}]
  %s7 = inlined_call_operand.vmem [shape: f32[1,128], index: 7, kind: input, shape index: {}]
  %s8 = inlined_call_operand.vmem [shape: bf16[128,32], index: 8, kind: input, shape index: {}]
  %s9 = inlined_call_operand.vmem [shape: f32[1,32], index: 9, kind: input, shape index: {}]
  %s10 = inlined_call_operand.vmem [shape: bf16[24,32], index: 10, kind: output, shape index: {}]
  %s11 = sld [smem:[#allocation0]]
  $region50: #{forward.13} parent=0
    _
  %s13 = ssub.s32 1, %s11
  %s14 = scalar_select 0, %s13, %s11
  // Predicated region
  $region2: #{forward.13} parent=0 // pred_check
    _
  $region3: #{forward.13} parent=0 // pred_check_branch
    %16 = sbr.rel (0) target = $region5
  $region4: #{forward.13} parent=0 // pred_region
    _
  $region5: #{forward.13} parent=0 // pred_fallthru
    _
  // Predicated region
  $region6: #{forward.13} parent=0 // pred_check
    _
  $region7: #{forward.13} parent=0 // pred_check_branch
    %18 = sbr.rel (0) target = $region9
  $region8: #{forward.13} parent=0 // pred_region
    _
  $region9: #{forward.13} parent=0 // pred_fallthru
    _
  // Predicated region
  $region10: #{forward.13} parent=0 // pred_check
    _
  $region11: #{forward.13} parent=0 // pred_check_branch
    %20 = sbr.rel (0) target = $region13
  $region12: #{forward.13} parent=0 // pred_region
    _
  $region13: #{forward.13} parent=0 // pred_fallthru
    _
  // Predicated region
  $region14: #{forward.13} parent=0 // pred_check
    _
  $region15: #{forward.13} parent=0 // pred_check_branch
    %22 = sbr.rel (0) target = $region17
  $region16: #{forward.13} parent=0 // pred_region
    _
  $region17: #{forward.13} parent=0 // pred_fallthru
    _
  // Predicated region
  $region18: #{forward.13} parent=0 // pred_check
    _
  $region19: #{forward.13} parent=0 // pred_check_branch
    %24 = sbr.rel (0) target = $region21
  $region20: #{forward.13} parent=0 // pred_region
    _
  $region21: #{forward.13} parent=0 // pred_fallthru
    _
  // Predicated region
  $region22: #{forward.13} parent=0 // pred_check
    _
  $region23: #{forward.13} parent=0 // pred_check_branch
    %26 = sbr.rel (0) target = $region25
  $region24: #{forward.13} parent=0 // pred_region
    _
  $region25: #{forward.13} parent=0 // pred_fallthru
    _
  // Predicated region
  $region26: #{forward.13} parent=0 // pred_check
    _
  $region27: #{forward.13} parent=0 // pred_check_branch
    %28 = sbr.rel (0) target = $region29
  $region28: #{forward.13} parent=0 // pred_region
    _
  $region29: #{forward.13} parent=0 // pred_fallthru
    _
  // Predicated region
  $region30: #{forward.13} parent=0 // pred_check
    _
  $region31: #{forward.13} parent=0 // pred_check_branch
    %30 = sbr.rel (0) target = $region33
  $region32: #{forward.13} parent=0 // pred_region
    _
  $region33: #{forward.13} parent=0 // pred_fallthru
    _
  // Predicated region
  $region34: #{forward.13} parent=0 // pred_check
    _
  $region35: #{forward.13} parent=0 // pred_check_branch
    %32 = sbr.rel (0) target = $region37
  $region36: #{forward.13} parent=0 // pred_region
    _
  $region37: #{forward.13} parent=0 // pred_fallthru
    _
  // Predicated region
  $region38: #{forward.13} parent=0 // pred_check
    _
  $region39: #{forward.13} parent=0 // pred_check_branch
    %34 = sbr.rel (0) target = $region41
  $region40: #{forward.13} parent=0 // pred_region
    _
  $region41: #{forward.13} parent=0 // pred_fallthru
    _
  %v36 = vld [vmem:[%s1] sm:$0xf]
  %v37 = vld [vmem:[%s1 + $0x4] sm:$0xf]
  %v38 = vld [vmem:[%s1 + $0x8] sm:$0xf]
  %v39 = vunpack.c.l.bf16 %v36
  %v40 = vunpack.c.l.bf16 %v37
  %v41 = vunpack.c.l.bf16 %v38
  %v42 = vld [vmem:[%s0] sm:$0xf]
  %v43 = vld [vmem:[%s0 + $0x4] sm:$0xf]
  %v44 = vld [vmem:[%s0 + $0x8] sm:$0xf]
  %v45 = vld [vmem:[%s2] sm:$0xf]
  %v46 = vld [vmem:[%s2 + $0x4] sm:$0xf]
  %v47 = vld [vmem:[%s2 + $0x8] sm:$0xf]
  %v48 = vld [vmem:[%s2 + $0xc] sm:$0xf]
  %v49 = vld [vmem:[%s3] sm:$0x1]
  %v51 = vlaneseq
  %v52 = vshrl.u32 %v51, 7
  %v53 = vsub.s32 0, %v52
  %v54 = vrot.slane %v49, %v53
  %v59 = vunpack.c.l.b16 %v42
  %v60 = vunpack.c.l.b16 %v43
  %v61 = vunpack.c.l.b16 %v44
  %v62 = vpack.c.b16 %v60, %v59
  %v63 = vpack.c.b16 %v61, %v61
  %v68 = vunpack.c.l.b16 %v45
  %v69 = vunpack.c.l.b16 %v46
  %v70 = vunpack.c.l.b16 %v47
  %v71 = vunpack.c.l.b16 %v48
  %v72 = vpack.c.b16 %v69, %v68
  %v73 = vpack.c.b16 %v71, %v70
  %vm76 = vcmask 261120
  %v78 = vsel %vm76, %v62, 0
  %v81 = vsel %vm76, %v63, 0
  %83 = vmatprep.subr.bf16.mxu0 0
  %84 = vmatpush1.bf16.msra.mxu0 0
  %85 = vmatprep.subr.bf16.mxu0 0
  %86 = vmatpush1.bf16.msra.mxu0 0
  %87 = vmatprep.subr.bf16.mxu0 0
  %88 = vmatpush1.bf16.msra.mxu0 0
  %89 = vmatprep.subr.bf16.mxu0 0
  %90 = vmatpush1.bf16.msra.mxu0 0
  %91 = vmatprep.subr.bf16.mxu0 0
  %92 = vmatpush1.bf16.msra.mxu0 0
  %93 = vmatprep.subr.bf16.mxu0 0
  %94 = vmatpush1.bf16.msra.mxu0 0
  %95 = vmatprep.subr.bf16.mxu0 0
  %96 = vmatpush1.bf16.msra.mxu0 %v73
  %97 = vmatprep.subr.bf16.mxu0 0
  %98 = vmatpush1.bf16.msra.mxu0 %v72
  %99 = vmatprep.subr.bf16.mxu0 0
  %100 = vmatpush2.bf16.msra.mxu0 0
  %101 = vmatprep.subr.bf16.mxu0 0
  %102 = vmatpush2.bf16.msra.mxu0 0
  %103 = vmatprep.subr.bf16.mxu0 0
  %104 = vmatpush2.bf16.msra.mxu0 0
  %105 = vmatprep.subr.bf16.mxu0 0
  %106 = vmatpush2.bf16.msra.mxu0 0
  %107 = vmatprep.subr.bf16.mxu0 0
  %108 = vmatpush2.bf16.msra.mxu0 0
  %109 = vmatprep.subr.bf16.mxu0 0
  %110 = vmatpush2.bf16.msra.mxu0 0
  %111 = vmatprep.subr.bf16.mxu0 0
  %112 = vmatpush2.bf16.msra.mxu0 0
  %113 = vmatprep.subr.bf16.mxu0 0
  %114 = vmatpush2.bf16.msra.mxu0 0
  %115 = vmatprep.mubr.bf16.mxu0 0
  %116 = vmatmul.mubr.bf16.gmra.mxu0 %v78
  %v117 = vpop.f32.mrf.mxu0
  %v118 = vadd.f32 %v54, %v117
  %v119 = vpop.f32.mrf.mxu0
  %v120 = vpop.f32.mrf.mxu0
  %v121 = vadd.f32 %v54, %v120
  %v122 = vpop.f32.mrf.mxu0
  %123 = vmatprep.mubr.bf16.mxu0 0
  %124 = vmatmul.mubr.bf16.gmra.mxu0 %v81
  %v125 = vpop.f32.mrf.mxu0
  %v126 = vadd.f32 %v54, %v125
  %v127 = vpop.f32.mrf.mxu0
  %v128 = vpop.f32.mrf.mxu0
  %v129 = vpop.f32.mrf.mxu0
  %130 = vdwg.mxu0
  %v131 = vadd.f32 %v39, %v118
  %v132 = vadd.f32 %v40, %v121
  %v133 = vadd.f32 %v41, %v126
  %v134 = vld [vmem:[%s4] sm:$0x1]
  %v135 = vld [vmem:[%s5] sm:$0x1]
  %v136 = vsel %vm76, %v131, 0.0
  %137 = vadd.xlane.f32.xlu0 %v136
  %v138 = vpop.xlane.xlu0 %137
  %v139 = vsel %vm76, %v132, 0.0
  %140 = vadd.xlane.f32.xlu0 %v139
  %v141 = vpop.xlane.xlu0 %140
  %v142 = vsel %vm76, %v133, 0.0
  %143 = vadd.xlane.f32.xlu0 %v142
  %v144 = vpop.xlane.xlu0 %143
  %v145 = vrcp.pop 32.0
  %v146 = vmul.f32 %v138, %v145
  %v147 = vmul.f32 %v141, %v145
  %v148 = vmul.f32 %v144, %v145
  %v149 = vsub.f32 %v131, %v146
  %v150 = vsub.f32 %v132, %v147
  %v151 = vsub.f32 %v133, %v148
  %v152 = vmul.f32 %v149, %v149
  %v153 = vmul.f32 %v150, %v150
  %v154 = vmul.f32 %v151, %v151
  %v155 = vsel %vm76, %v152, 0.0
  %156 = vadd.xlane.f32.xlu0 %v155
  %v157 = vpop.xlane.xlu0 %156
  %v158 = vsel %vm76, %v153, 0.0
  %159 = vadd.xlane.f32.xlu0 %v158
  %v160 = vpop.xlane.xlu0 %159
  %v161 = vsel %vm76, %v154, 0.0
  %162 = vadd.xlane.f32.xlu0 %v161
  %v163 = vpop.xlane.xlu0 %162
  %v164 = vmul.f32 %v157, %v145
  %v165 = vmul.f32 %v160, %v145
  %v166 = vmul.f32 %v163, %v145
  %v167 = vadd.f32 %v164, 1e-06
  %v168 = vadd.f32 %v165, 1e-06
  %v169 = vadd.f32 %v166, 1e-06
  %v170 = vrsqrt.pop %v167
  %v171 = vrsqrt.pop %v168
  %v172 = vrsqrt.pop %v169
  %v173 = vmul.f32 %v149, %v170
  %v174 = vmul.f32 %v150, %v171
  %v175 = vmul.f32 %v151, %v172
  %v177 = vlaneseq
  %v178 = vshrl.u32 %v177, 7
  %v179 = vsub.s32 0, %v178
  %v180 = vrot.slane %v134, %v179
  %v182 = vmul.f32 %v173, %v180
  %v183 = vmul.f32 %v174, %v180
  %v184 = vmul.f32 %v175, %v180
  %v186 = vlaneseq
  %v187 = vshrl.u32 %v186, 7
  %v188 = vsub.s32 0, %v187
  %v189 = vrot.slane %v135, %v188
  %v191 = vadd.f32 %v182, %v189
  %v192 = vadd.f32 %v183, %v189
  %v193 = vadd.f32 %v184, %v189
  %v194 = vpack.c.bf16 %v192, %v191
  %v195 = vpack.c.bf16 %v193, %v193
  %v196 = vld [vmem:[%s6] sm:$0xf]
  %v197 = vld [vmem:[%s6 + $0x4] sm:$0xf]
  %v198 = vld [vmem:[%s6 + $0x8] sm:$0xf]
  %v199 = vld [vmem:[%s6 + $0xc] sm:$0xf]
  %v200 = vld [vmem:[%s7] sm:$0x1]
  %v202 = vlaneseq
  %v203 = vshrl.u32 %v202, 7
  %v204 = vsub.s32 0, %v203
  %v205 = vrot.slane %v200, %v204
  %v211 = vunpack.c.l.b16 %v196
  %v212 = vunpack.c.l.b16 %v197
  %v213 = vunpack.c.l.b16 %v198
  %v214 = vunpack.c.l.b16 %v199
  %v215 = vpack.c.b16 %v212, %v211
  %v216 = vpack.c.b16 %v214, %v213
  %v220 = vsel %vm76, %v194, 0
  %v223 = vsel %vm76, %v195, 0
  %225 = vmatprep.subr.bf16.mxu0 0
  %226 = vmatpush1.bf16.msra.mxu0 0
  %227 = vmatprep.subr.bf16.mxu0 0
  %228 = vmatpush1.bf16.msra.mxu0 0
  %229 = vmatprep.subr.bf16.mxu0 0
  %230 = vmatpush1.bf16.msra.mxu0 0
  %231 = vmatprep.subr.bf16.mxu0 0
  %232 = vmatpush1.bf16.msra.mxu0 0
  %233 = vmatprep.subr.bf16.mxu0 0
  %234 = vmatpush1.bf16.msra.mxu0 0
  %235 = vmatprep.subr.bf16.mxu0 0
  %236 = vmatpush1.bf16.msra.mxu0 0
  %237 = vmatprep.subr.bf16.mxu0 0
  %238 = vmatpush1.bf16.msra.mxu0 %v216
  %239 = vmatprep.subr.bf16.mxu0 0
  %240 = vmatpush1.bf16.msra.mxu0 %v215
  %241 = vmatprep.subr.bf16.mxu0 0
  %242 = vmatpush2.bf16.msra.mxu0 0
  %243 = vmatprep.subr.bf16.mxu0 0
  %244 = vmatpush2.bf16.msra.mxu0 0
  %245 = vmatprep.subr.bf16.mxu0 0
  %246 = vmatpush2.bf16.msra.mxu0 0
  %247 = vmatprep.subr.bf16.mxu0 0
  %248 = vmatpush2.bf16.msra.mxu0 0
  %249 = vmatprep.subr.bf16.mxu0 0
  %250 = vmatpush2.bf16.msra.mxu0 0
  %251 = vmatprep.subr.bf16.mxu0 0
  %252 = vmatpush2.bf16.msra.mxu0 0
  %253 = vmatprep.subr.bf16.mxu0 0
  %254 = vmatpush2.bf16.msra.mxu0 0
  %255 = vmatprep.subr.bf16.mxu0 0
  %256 = vmatpush2.bf16.msra.mxu0 0
  %257 = vmatprep.mubr.bf16.mxu0 0
  %258 = vmatmul.mubr.bf16.gmra.mxu0 %v220
  %v259 = vpop.f32.mrf.mxu0
  %v260 = vadd.f32 %v205, %v259
  %v261 = vpop.f32.mrf.mxu0
  %v262 = vpop.f32.mrf.mxu0
  %v263 = vadd.f32 %v205, %v262
  %v264 = vpop.f32.mrf.mxu0
  %265 = vmatprep.mubr.bf16.mxu0 0
  %266 = vmatmul.mubr.bf16.gmra.mxu0 %v223
  %v267 = vpop.f32.mrf.mxu0
  %v268 = vadd.f32 %v205, %v267
  %v269 = vpop.f32.mrf.mxu0
  %v270 = vpop.f32.mrf.mxu0
  %v271 = vpop.f32.mrf.mxu0
  %272 = vdwg.mxu0
  %v273 = vmul.f32 %v260, %v260
  %v274 = vmul.f32 %v263, %v263
  %v275 = vmul.f32 %v268, %v268
  %v276 = vmul.f32 %v260, %v273
  %v277 = vmul.f32 %v263, %v274
  %v278 = vmul.f32 %v268, %v275
  %v279 = vmul.f32 %v276, 0.044715
  %v280 = vmul.f32 %v277, 0.044715
  %v281 = vmul.f32 %v278, 0.044715
  %v282 = vadd.f32 %v260, %v279
  %v283 = vadd.f32 %v263, %v280
  %v284 = vadd.f32 %v268, %v281
  %v285 = vmul.f32 %v282, 0.7978846
  %v286 = vmul.f32 %v283, 0.7978846
  %v287 = vmul.f32 %v284, 0.7978846
  %v288 = vtanh.pop %v285
  %v289 = vtanh.pop %v286
  %v290 = vtanh.pop %v287
  %v291 = vadd.f32 %v288, 1.0
  %v292 = vadd.f32 %v289, 1.0
  %v293 = vadd.f32 %v290, 1.0
  %v294 = vmul.f32 %v291, 0.5
  %v295 = vmul.f32 %v292, 0.5
  %v296 = vmul.f32 %v293, 0.5
  %v297 = vmul.f32 %v260, %v294
  %v298 = vmul.f32 %v263, %v295
  %v299 = vmul.f32 %v268, %v296
  %v300 = vpack.c.bf16 %v298, %v297
  %v301 = vpack.c.bf16 %v299, %v299
  %v302 = vld [vmem:[%s8] sm:$0xf]
  %v303 = vld [vmem:[%s8 + $0x4] sm:$0xf]
  %v304 = vld [vmem:[%s8 + $0x8] sm:$0xf]
  %v305 = vld [vmem:[%s8 + $0xc] sm:$0xf]
  %v306 = vld [vmem:[%s8 + $0x10] sm:$0xf]
  %v307 = vld [vmem:[%s8 + $0x14] sm:$0xf]
  %v308 = vld [vmem:[%s8 + $0x18] sm:$0xf]
  %v309 = vld [vmem:[%s8 + $0x1c] sm:$0xf]
  %v310 = vld [vmem:[%s8 + $0x20] sm:$0xf]
  %v311 = vld [vmem:[%s8 + $0x24] sm:$0xf]
  %v312 = vld [vmem:[%s8 + $0x28] sm:$0xf]
  %v313 = vld [vmem:[%s8 + $0x2c] sm:$0xf]
  %v314 = vld [vmem:[%s8 + $0x30] sm:$0xf]
  %v315 = vld [vmem:[%s8 + $0x34] sm:$0xf]
  %v316 = vld [vmem:[%s8 + $0x38] sm:$0xf]
  %v317 = vld [vmem:[%s8 + $0x3c] sm:$0xf]
  %v318 = vld [vmem:[%s9] sm:$0x1]
  %v320 = vlaneseq
  %v321 = vshrl.u32 %v320, 7
  %v322 = vsub.s32 0, %v321
  %v323 = vrot.slane %v318, %v322
  %v341 = vunpack.c.l.b16 %v302
  %v342 = vunpack.c.l.b16 %v303
  %v343 = vunpack.c.l.b16 %v304
  %v344 = vunpack.c.l.b16 %v305
  %v345 = vunpack.c.l.b16 %v306
  %v346 = vunpack.c.l.b16 %v307
  %v347 = vunpack.c.l.b16 %v308
  %v348 = vunpack.c.l.b16 %v309
  %v349 = vunpack.c.l.b16 %v310
  %v350 = vunpack.c.l.b16 %v311
  %v351 = vunpack.c.l.b16 %v312
  %v352 = vunpack.c.l.b16 %v313
  %v353 = vunpack.c.l.b16 %v314
  %v354 = vunpack.c.l.b16 %v315
  %v355 = vunpack.c.l.b16 %v316
  %v356 = vunpack.c.l.b16 %v317
  %v357 = vpack.c.b16 %v342, %v341
  %v358 = vpack.c.b16 %v344, %v343
  %v359 = vpack.c.b16 %v346, %v345
  %v360 = vpack.c.b16 %v348, %v347
  %v361 = vpack.c.b16 %v350, %v349
  %v362 = vpack.c.b16 %v352, %v351
  %v363 = vpack.c.b16 %v354, %v353
  %v364 = vpack.c.b16 %v356, %v355
  %373 = vmatprep.subr.bf16.mxu0 0
  %374 = vmatpush1.bf16.msra.mxu0 %v364
  %375 = vmatprep.subr.bf16.mxu0 0
  %376 = vmatpush1.bf16.msra.mxu0 %v363
  %377 = vmatprep.subr.bf16.mxu0 0
  %378 = vmatpush1.bf16.msra.mxu0 %v362
  %379 = vmatprep.subr.bf16.mxu0 0
  %380 = vmatpush1.bf16.msra.mxu0 %v361
  %381 = vmatprep.subr.bf16.mxu0 0
  %382 = vmatpush1.bf16.msra.mxu0 %v360
  %383 = vmatprep.subr.bf16.mxu0 0
  %384 = vmatpush1.bf16.msra.mxu0 %v359
  %385 = vmatprep.subr.bf16.mxu0 0
  %386 = vmatpush1.bf16.msra.mxu0 %v358
  %387 = vmatprep.subr.bf16.mxu0 0
  %388 = vmatpush1.bf16.msra.mxu0 %v357
  %389 = vmatprep.subr.bf16.mxu0 0
  %390 = vmatpush2.bf16.msra.mxu0 0
  %391 = vmatprep.subr.bf16.mxu0 0
  %392 = vmatpush2.bf16.msra.mxu0 0
  %393 = vmatprep.subr.bf16.mxu0 0
  %394 = vmatpush2.bf16.msra.mxu0 0
  %395 = vmatprep.subr.bf16.mxu0 0
  %396 = vmatpush2.bf16.msra.mxu0 0
  %397 = vmatprep.subr.bf16.mxu0 0
  %398 = vmatpush2.bf16.msra.mxu0 0
  %399 = vmatprep.subr.bf16.mxu0 0
  %400 = vmatpush2.bf16.msra.mxu0 0
  %401 = vmatprep.subr.bf16.mxu0 0
  %402 = vmatpush2.bf16.msra.mxu0 0
  %403 = vmatprep.subr.bf16.mxu0 0
  %404 = vmatpush2.bf16.msra.mxu0 0
  %405 = vmatprep.mubr.bf16.mxu0 0
  %406 = vmatmul.mubr.bf16.gmra.mxu0 %v300
  %v407 = vpop.f32.mrf.mxu0
  %v408 = vadd.f32 %v323, %v407
  %v409 = vpop.f32.mrf.mxu0
  %v410 = vpop.f32.mrf.mxu0
  %v411 = vadd.f32 %v323, %v410
  %v412 = vpop.f32.mrf.mxu0
  %413 = vmatprep.mubr.bf16.mxu0 0
  %414 = vmatmul.mubr.bf16.gmra.mxu0 %v301
  %v415 = vpop.f32.mrf.mxu0
  %v416 = vadd.f32 %v323, %v415
  %v417 = vpop.f32.mrf.mxu0
  %v418 = vpop.f32.mrf.mxu0
  %v419 = vpop.f32.mrf.mxu0
  %420 = vdwg.mxu0
  %v421 = vadd.f32 %v131, %v408
  %v422 = vadd.f32 %v132, %v411
  %v423 = vadd.f32 %v133, %v416
  %v424 = vpack.c.bf16 %v422, %v421
  %v425 = vpack.c.bf16 %v423, %v423
  %v428 = vunpack.c.l.b16 %v424
  %v429 = vunpack.c.h.b16 %v424
  %v430 = vunpack.c.l.b16 %v425
  %v431 = vpack.c.b16 %v428, %v428
  %v432 = vpack.c.b16 %v429, %v429
  %v433 = vpack.c.b16 %v430, %v430
  %vm437 = vcmask 257024
  %438 = vst.msk [vmem:[%s10] sm:$0xf] %vm437, %v431
  %439 = vst.msk [vmem:[%s10 + $0x4] sm:$0xf] %vm437, %v432
  %440 = vst.msk [vmem:[%s10 + $0x8] sm:$0xf] %vm437, %v433
  // Predicated region
  $region42: #{forward.13} parent=0 // pred_check
    _
  $region43: #{forward.13} parent=0 // pred_check_branch
    %442 = sbr.rel (0) target = $region45
  $region44: #{forward.13} parent=0 // pred_region
    _
  $region45: #{forward.13} parent=0 // pred_fallthru
    _
  // Predicated region
  $region46: #{forward.13} parent=0 // pred_check
    _
  $region47: #{forward.13} parent=0 // pred_check_branch
    %444 = sbr.rel (0) target = $region49
  $region48: #{forward.13} parent=0 // pred_region
    _
  $region49: #{forward.13} parent=0 // pred_fallthru
    _

</llo_original>
